<compile_context>
chip_gen: v7x
topology: tpu7x:2x2x1
jax: 0.10.0
libtpu: 0.0.40
codegen_flags: <defaults>
</compile_context>

<pallas_src>
import functools

import jax
import jax.numpy as jnp
from jax.experimental import pallas as pl
from jax.experimental.pallas import tpu as pltpu

FEAT_DIM = 512        # ViT feature width (fixed by the module: policy input is 512)
LANE = 128            # TPU lane width
SUBLANE_BF16 = 16     # bf16 packs 16 sublanes per vreg


def _round_up(x, m):
    return (x + m - 1) // m * m


def _pad_to(x, axis, target):
    pad = target - x.shape[axis]
    if pad == 0:
        return x
    widths = [(0, 0)] * x.ndim
    widths[axis] = (0, pad)
    return jnp.pad(x, widths)


def _vmem_capacity_bytes():
    try:
        return int(pltpu.get_tpu_info().vmem_capacity_bytes)
    except Exception:
        return 64 * 1024 * 1024   # conservative: v7x per-core VMEM


# ----------------------------------------------------------------------------
# Import-time probe: is single-buffering (pl.Buffered(1)) of constant-index
# operands supported + numerically correct on this backend?  Fall back to the
# default double-buffering (previously validated config) if not.
# ----------------------------------------------------------------------------
def _probe_single_buffering():
    try:
        def _k(x_ref, w_ref, o_ref):
            o_ref[...] = x_ref[...] + w_ref[...]

        x = jnp.arange(16 * 128, dtype=jnp.float32).reshape(16, 128)
        w = jnp.ones((8, 128), jnp.float32)
        out = pl.pallas_call(
            _k,
            out_shape=jax.ShapeDtypeStruct((16, 128), jnp.float32),
            grid=(2,),
            in_specs=[
                pl.BlockSpec((8, 128), lambda i: (i, 0)),
                pl.BlockSpec((8, 128), lambda i: (0, 0),
                             pipeline_mode=pl.Buffered(1)),
            ],
            out_specs=pl.BlockSpec((8, 128), lambda i: (i, 0)),
        )(x, w)
        jax.block_until_ready(out)
        return bool(jnp.allclose(out, x + 1.0))
    except Exception:
        return False


_RESIDENT_PIPELINE_MODE = pl.Buffered(1) if _probe_single_buffering() else None


def _resident_spec(block_shape, index_map):
    """BlockSpec for an operand whose block index never changes (VMEM-resident)."""
    if _RESIDENT_PIPELINE_MODE is not None:
        return pl.BlockSpec(block_shape, index_map,
                            pipeline_mode=_RESIDENT_PIPELINE_MODE)
    return pl.BlockSpec(block_shape, index_map)


# ----------------------------------------------------------------------------
# Static tiling plan (Python ints only; evaluated at trace time).
# ----------------------------------------------------------------------------
def _plan(batch, obs_dim, Hp, Ap, vmem_cap):
    budget = int(vmem_cap * 0.70)
    Kp128 = _round_up(obs_dim, LANE)

    # Batch tiling: multiples of 16 rows (bf16 sublane packing); prefer >= 2
    # batch tiles so the "parallel" axis can be split across TensorCores (v7x),
    # and grow tile_b (up to 512) so the projection becomes compute-bound.
    if batch <= SUBLANE_BF16:
        tb0 = SUBLANE_BF16
    else:
        tb0 = min(512, _round_up((batch + 1) // 2, SUBLANE_BF16))
    tb_candidates = [tb0] + [t for t in (256, 128, 64, 32, 16) if t < tb0]

    def resident_mlp_bytes(tb):
        w = 2 * (FEAT_DIM * Hp + 2 * Hp * Hp + Hp * Ap)     # bf16 MLP weights (1 buffer)
        b = 4 * (FEAT_DIM + 3 * Hp + Ap)                    # f32 biases
        outs = 2 * 4 * tb * (Ap + FEAT_DIM)                 # double-buffered f32 outputs
        act = 6 * 4 * tb * max(Hp, FEAT_DIM)                # MLP working-set slack
        return w + b + outs + act + (2 << 20)               # + misc slack

    # 1) Fully VMEM-resident w_vit: single grid axis, no accumulator, no K re-streaming.
    for tb in tb_candidates:
        need = (resident_mlp_bytes(tb)
                + 2 * Kp128 * FEAT_DIM                      # w_vit bf16, single-buffered
                + 2 * 4 * tb * Kp128)                       # f32 obs block, double-buffered
        if need <= budget:
            Bp = _round_up(max(batch, tb), tb)
            return dict(resident=True, tile_b=tb, Bp=Bp, nb=Bp // tb,
                        tile_k=Kp128, Kp=Kp128, nk=1)

    # 2) K-tiled fallback: large K tiles (fewer grid steps, bigger DMAs).
    for tb in tb_candidates:
        for tk in (2048, 1024, 512):
            tk = min(tk, Kp128)
            need = (resident_mlp_bytes(tb)
                    + 2 * 2 * tk * FEAT_DIM                 # w_vit K-tile bf16, 2 buffers
                    + 2 * 4 * tb * tk                       # f32 obs K-tile, 2 buffers
                    + 4 * tb * FEAT_DIM)                    # f32 accumulator
            if need <= budget:
                Kp = _round_up(obs_dim, tk)
                Bp = _round_up(max(batch, tb), tb)
                return dict(resident=False, tile_b=tb, Bp=Bp, nb=Bp // tb,
                            tile_k=tk, Kp=Kp, nk=Kp // tk)

    # 3) Last resort: smallest tiles.
    tk = min(512, Kp128)
    Kp = _round_up(obs_dim, tk)
    Bp = _round_up(max(batch, 16), 16)
    return dict(resident=False, tile_b=16, Bp=Bp, nb=Bp // 16,
                tile_k=tk, Kp=Kp, nk=Kp // tk)


# ----------------------------------------------------------------------------
# Kernels
# ----------------------------------------------------------------------------
def _policy_mlp(feat_f32, w1_ref, b1_ref, w2_ref, b2_ref, w3_ref, b3_ref,
                w4_ref, b4_ref):
    # policy = Linear(512,H) -> ReLU -> Linear(H,H) -> ReLU -> Linear(H,H) -> ReLU -> Linear(H,A)
    h = feat_f32.astype(jnp.bfloat16)
    h = jnp.dot(h, w1_ref[...], preferred_element_type=jnp.float32) + b1_ref[...]
    h = jnp.maximum(h, 0.0).astype(jnp.bfloat16)
    h = jnp.dot(h, w2_ref[...], preferred_element_type=jnp.float32) + b2_ref[...]
    h = jnp.maximum(h, 0.0).astype(jnp.bfloat16)
    h = jnp.dot(h, w3_ref[...], preferred_element_type=jnp.float32) + b3_ref[...]
    h = jnp.maximum(h, 0.0).astype(jnp.bfloat16)
    return jnp.dot(h, w4_ref[...], preferred_element_type=jnp.float32) + b4_ref[...]


def _sac_kernel_resident(obs_ref, w_vit_ref, b_vit_ref,
                         w1_ref, b1_ref, w2_ref, b2_ref, w3_ref, b3_ref,
                         w4_ref, b4_ref, logits_ref, feat_ref):
    # TODO(synk): vit_encoder is an externally-injected module in the PyTorch code; a single
    # linear projection to 512 features stands in for it here.
    x = obs_ref[...].astype(jnp.bfloat16)               # in-kernel f32 -> bf16 cast
    feat = jnp.dot(x, w_vit_ref[...],
                   preferred_element_type=jnp.float32) + b_vit_ref[...]
    feat_ref[...] = feat.astype(feat_ref.dtype)
    logits = _policy_mlp(feat, w1_ref, b1_ref, w2_ref, b2_ref, w3_ref, b3_ref,
                         w4_ref, b4_ref)
    logits_ref[...] = logits.astype(logits_ref.dtype)


def _sac_kernel_ktiled(obs_ref, w_vit_ref, b_vit_ref,
                       w1_ref, b1_ref, w2_ref, b2_ref, w3_ref, b3_ref,
                       w4_ref, b4_ref, logits_ref, feat_ref, acc_ref):
    k = pl.program_id(1)
    x = obs_ref[...].astype(jnp.bfloat16)                # in-kernel f32 -> bf16 cast
    part = jnp.dot(x, w_vit_ref[...], preferred_element_type=jnp.float32)

    @pl.when(k == 0)
    def _():
        acc_ref[...] = part                              # init folded into first K step

    @pl.when(k > 0)
    def _():
        acc_ref[...] += part

    @pl.when(k == pl.num_programs(1) - 1)
    def _():
        feat = acc_ref[...] + b_vit_ref[...]
        feat_ref[...] = feat.astype(feat_ref.dtype)
        logits = _policy_mlp(feat, w1_ref, b1_ref, w2_ref, b2_ref, w3_ref, b3_ref,
                             w4_ref, b4_ref)
        logits_ref[...] = logits.astype(logits_ref.dtype)


# ----------------------------------------------------------------------------
# Wrapper
# ----------------------------------------------------------------------------
@functools.partial(jax.jit, static_argnames=("action_dim",))
def sac_forward(obs_nchw, params, *, action_dim):
    """obs_nchw: (B, C, H, W) float32.  Returns (logits (B, A), feat (B, 512)) in f32."""
    B = obs_nchw.shape[0]
    obs_flat = obs_nchw.reshape(B, -1)               # == torch .view(B, -1) on NCHW
    obs_dim = obs_flat.shape[1]
    hidden = params["w1"].shape[1]

    Hp = _round_up(hidden, LANE)
    Ap = _round_up(action_dim, LANE)                  # lane-dense logits output
    vmem_cap = _vmem_capacity_bytes()
    cfg = _plan(B, obs_dim, Hp, Ap, vmem_cap)
    tile_b, Bp, nb = cfg["tile_b"], cfg["Bp"], cfg["nb"]
    tile_k, Kp, nk = cfg["tile_k"], cfg["Kp"], cfg["nk"]
    resident = cfg["resident"]

    bf16, f32 = jnp.bfloat16, jnp.float32

    # obs stays in f32: the bf16 cast happens inside the kernel (saves an HBM pass).
    obs_p = _pad_to(_pad_to(obs_flat, 0, Bp), 1, Kp)
    w_vit = _pad_to(params["w_vit"], 0, Kp).astype(bf16)
    b_vit = params["b_vit"].astype(f32)
    w1 = _pad_to(params["w1"], 1, Hp).astype(bf16)
    b1 = _pad_to(params["b1"], 1, Hp).astype(f32)
    w2 = _pad_to(_pad_to(params["w2"], 0, Hp), 1, Hp).astype(bf16)
    b2 = _pad_to(params["b2"], 1, Hp).astype(f32)
    w3 = _pad_to(_pad_to(params["w3"], 0, Hp), 1, Hp).astype(bf16)
    b3 = _pad_to(params["b3"], 1, Hp).astype(f32)
    w4 = _pad_to(_pad_to(params["w4"], 0, Hp), 1, Ap).astype(bf16)
    b4 = _pad_to(params["b4"], 1, Ap).astype(f32)

    # Cost estimate (w_vit is re-streamed per batch tile only in the K-tiled path).
    flops = 2 * Bp * (Kp * FEAT_DIM + FEAT_DIM * Hp + 2 * Hp * Hp + Hp * Ap)
    bytes_accessed = (
        Bp * Kp * obs_p.dtype.itemsize
        + (1 if resident else nb) * Kp * FEAT_DIM * 2
        + (FEAT_DIM * Hp + 2 * Hp * Hp + Hp * Ap) * 2
        + (FEAT_DIM + 3 * Hp + Ap) * 4
        + (Bp * Ap + Bp * FEAT_DIM) * 4
    )

    if resident:
        grid = (nb,)
        in_specs = [
            pl.BlockSpec((tile_b, Kp), lambda i: (i, 0)),          # obs batch tiles (pipelined)
            _resident_spec((Kp, FEAT_DIM), lambda i: (0, 0)),      # w_vit fully resident
            _resident_spec((1, FEAT_DIM), lambda i: (0, 0)),       # b_vit
            _resident_spec((FEAT_DIM, Hp), lambda i: (0, 0)),      # w1
            _resident_spec((1, Hp), lambda i: (0, 0)),             # b1
            _resident_spec((Hp, Hp), lambda i: (0, 0)),            # w2
            _resident_spec((1, Hp), lambda i: (0, 0)),             # b2
            _resident_spec((Hp, Hp), lambda i: (0, 0)),            # w3
            _resident_spec((1, Hp), lambda i: (0, 0)),             # b3
            _resident_spec((Hp, Ap), lambda i: (0, 0)),            # w4 (lane-padded)
            _resident_spec((1, Ap), lambda i: (0, 0)),             # b4
        ]
        out_specs = (
            pl.BlockSpec((tile_b, Ap), lambda i: (i, 0)),          # logits (lane-dense)
            pl.BlockSpec((tile_b, FEAT_DIM), lambda i: (i, 0)),    # feat
        )
        scratch_shapes = []
        kernel = _sac_kernel_resident
        dim_sem = ("parallel",)
    else:
        grid = (nb, nk)
        in_specs = [
            pl.BlockSpec((tile_b, tile_k), lambda i, k: (i, k)),        # obs batch x K tiles
            pl.BlockSpec((tile_k, FEAT_DIM), lambda i, k: (k, 0)),      # w_vit K tiles (pipelined)
            _resident_spec((1, FEAT_DIM), lambda i, k: (0, 0)),         # b_vit
            _resident_spec((FEAT_DIM, Hp), lambda i, k: (0, 0)),        # w1
            _resident_spec((1, Hp), lambda i, k: (0, 0)),               # b1
            _resident_spec((Hp, Hp), lambda i, k: (0, 0)),              # w2
            _resident_spec((1, Hp), lambda i, k: (0, 0)),               # b2
            _resident_spec((Hp, Hp), lambda i, k: (0, 0)),              # w3
            _resident_spec((1, Hp), lambda i, k: (0, 0)),               # b3
            _resident_spec((Hp, Ap), lambda i, k: (0, 0)),              # w4 (lane-padded)
            _resident_spec((1, Ap), lambda i, k: (0, 0)),               # b4
        ]
        out_specs = (
            pl.BlockSpec((tile_b, Ap), lambda i, k: (i, 0)),            # logits
            pl.BlockSpec((tile_b, FEAT_DIM), lambda i, k: (i, 0)),      # feat
        )
        scratch_shapes = [pltpu.VMEM((tile_b, FEAT_DIM), jnp.float32)]
        kernel = _sac_kernel_ktiled
        dim_sem = ("parallel", "arbitrary")

    grid_spec = pltpu.PrefetchScalarGridSpec(
        num_scalar_prefetch=0,
        grid=grid,
        in_specs=in_specs,
        out_specs=out_specs,
        scratch_shapes=scratch_shapes,
    )

    vmem_limit = min(int(vmem_cap * 0.75), 112 * 1024 * 1024)

    logits_p, feat_p = pl.pallas_call(
        kernel,
        out_shape=(
            jax.ShapeDtypeStruct((Bp, Ap), jnp.float32),
            jax.ShapeDtypeStruct((Bp, FEAT_DIM), jnp.float32),
        ),
        grid_spec=grid_spec,
        compiler_params=pltpu.CompilerParams(
            dimension_semantics=dim_sem,
            vmem_limit_bytes=vmem_limit,
        ),
        cost_estimate=pl.CostEstimate(
            flops=flops, transcendentals=0, bytes_accessed=bytes_accessed),
    )(obs_p, w_vit, b_vit, w1, b1, w2, b2, w3, b3, w4, b4)

    return logits_p[:B, :action_dim], feat_p[:B, :]


# ----------------------------------------------------------------------------
# Deterministic parameter init (matches nn.Linear default: U(-1/sqrt(fan_in), +1/sqrt(fan_in))).
# Weights are stored as (in_features, out_features) == PyTorch weight.T.
# ----------------------------------------------------------------------------
def init_linear(key, fan_in, fan_out):
    kw, kb = jax.random.split(key)
    bound = 1.0 / jnp.sqrt(jnp.float32(fan_in))
    w = jax.random.uniform(kw, (fan_in, fan_out), jnp.float32, -bound, bound)
    b = jax.random.uniform(kb, (1, fan_out), jnp.float32, -bound, bound)
    return w, b


def init_params(key, obs_dim, hidden_dim, action_dim):
    keys = jax.random.split(key, 5)
    w_vit, b_vit = init_linear(keys[0], obs_dim, FEAT_DIM)
    w1, b1 = init_linear(keys[1], FEAT_DIM, hidden_dim)
    w2, b2 = init_linear(keys[2], hidden_dim, hidden_dim)
    w3, b3 = init_linear(keys[3], hidden_dim, hidden_dim)
    w4, b4 = init_linear(keys[4], hidden_dim, action_dim)
    return {
        "w_vit": w_vit, "b_vit": b_vit,
        "w1": w1, "b1": b1,
        "w2": w2, "b2": b2,
        "w3": w3, "b3": b3,
        "w4": w4, "b4": b4,
    }


if __name__ == "__main__":
    # Small shapes consistent with the module's forward.
    B, C, H, W = 2, 4, 16, 16          # NCHW observation
    HIDDEN = 128                       # hidden_dim (default 1024 in module; small here)
    ACTION_DIM = 8

    key = jax.random.PRNGKey(0)
    k_obs, k_param = jax.random.split(key)

    obs = jax.random.normal(k_obs, (B, C, H, W), jnp.float32)
    params = init_params(k_param, C * H * W, HIDDEN, ACTION_DIM)

    logits, feat = sac_forward(obs, params, action_dim=ACTION_DIM)
    jax.block_until_ready((logits, feat))

    # Pure-JAX reference of the same math (same bf16 inputs, f32 accumulation).
    obs_flat = obs.reshape(B, -1).astype(jnp.bfloat16)
    w_vit_bf = params["w_vit"].astype(jnp.bfloat16)
    ref_feat = jnp.dot(obs_flat, w_vit_bf,
                       preferred_element_type=jnp.float32) + params["b_vit"]

    def layer(x, w, b, relu=True):
        y = jnp.dot(x.astype(jnp.bfloat16), w.astype(jnp.bfloat16),
                    preferred_element_type=jnp.float32) + b
        return jnp.maximum(y, 0.0) if relu else y

    h = layer(ref_feat, params["w1"], params["b1"])
    h = layer(h, params["w2"], params["b2"])
    h = layer(h, params["w3"], params["b3"])
    ref_logits = layer(h, params["w4"], params["b4"], relu=False)

    assert logits.shape == (B, ACTION_DIM) and feat.shape == (B, FEAT_DIM)
    assert jnp.allclose(feat, ref_feat, atol=1e-2, rtol=1e-2), \
        float(jnp.max(jnp.abs(feat - ref_feat)))
    assert jnp.allclose(logits, ref_logits, atol=2e-2, rtol=2e-2), \
        float(jnp.max(jnp.abs(logits - ref_logits)))

    print("KERNEL_OK")
</pallas_src>

<mosaic_0001>
module attributes {stable_mosaic.version = 11 : i64} {
  func.func @_k(%arg0: i32, %arg1: memref<8x128xf32, #tpu.memory_space<vmem>>, %arg2: memref<8x128xf32, #tpu.memory_space<vmem>>, %arg3: memref<8x128xf32, #tpu.memory_space<vmem>>) attributes {dimension_semantics = [#tpu.dimension_semantics<arbitrary>], iteration_bounds = array<i64: 2>, scalar_prefetch = 0 : i64, scratch_operands = 0 : i64, tpu.core_type = #tpu.core_type<tc>, window_params = [{transform_indices = @transform_0, window_bounds = array<i64: 8, 128>}, {pipeline_mode = #tpu.pipeline_mode<synchronous>, transform_indices = @transform_1, window_bounds = array<i64: 8, 128>}, {transform_indices = @transform_2, window_bounds = array<i64: 8, 128>}]} {
    %c0 = arith.constant 0 : index
    %c0_0 = arith.constant 0 : index
    %0 = vector.load %arg1[%c0, %c0_0] : memref<8x128xf32, #tpu.memory_space<vmem>>, vector<8x128xf32>
    %c0_1 = arith.constant 0 : index
    %c0_2 = arith.constant 0 : index
    %1 = vector.load %arg2[%c0_1, %c0_2] : memref<8x128xf32, #tpu.memory_space<vmem>>, vector<8x128xf32>
    %2 = arith.addf %0, %1 : vector<8x128xf32>
    %c0_3 = arith.constant 0 : index
    %c0_4 = arith.constant 0 : index
    %3 = vector.load %arg3[%c0_3, %c0_4] : memref<8x128xf32, #tpu.memory_space<vmem>>, vector<8x128xf32>
    tpu.vector_store %arg3[%c0_3, %c0_4], %2 {strides = array<i32>} : memref<8x128xf32, #tpu.memory_space<vmem>>, vector<8x128xf32>,
    return
  }
  func.func @transform_0(%arg0: i32) -> (i32, i32) {
    %c0_i32 = arith.constant 0 : i32
    %c0_i32_0 = arith.constant 0 : i32
    return %arg0, %c0_i32 : i32, i32
  }
  func.func @transform_1(%arg0: i32) -> (i32, i32) {
    %c0_i32 = arith.constant 0 : i32
    %c0_i32_0 = arith.constant 0 : i32
    %c0_i32_1 = arith.constant 0 : i32
    return %c0_i32, %c0_i32_0 : i32, i32
  }
  func.func @transform_2(%arg0: i32) -> (i32, i32) {
    %c0_i32 = arith.constant 0 : i32
    %c0_i32_0 = arith.constant 0 : i32
    return %arg0, %c0_i32 : i32, i32
  }
}

module attributes {stable_mosaic.version = 11 : i64} {
  func.func @_sac_kernel_resident(%arg0: i32, %arg1: memref<16x1024xf32, #tpu.memory_space<vmem>>, %arg2: memref<1024x512xbf16, #tpu.memory_space<vmem>>, %arg3: memref<1x512xf32, #tpu.memory_space<vmem>>, %arg4: memref<512x128xbf16, #tpu.memory_space<vmem>>, %arg5: memref<1x128xf32, #tpu.memory_space<vmem>>, %arg6: memref<128x128xbf16, #tpu.memory_space<vmem>>, %arg7: memref<1x128xf32, #tpu.memory_space<vmem>>, %arg8: memref<128x128xbf16, #tpu.memory_space<vmem>>, %arg9: memref<1x128xf32, #tpu.memory_space<vmem>>, %arg10: memref<128x128xbf16, #tpu.memory_space<vmem>>, %arg11: memref<1x128xf32, #tpu.memory_space<vmem>>, %arg12: memref<16x128xf32, #tpu.memory_space<vmem>>, %arg13: memref<16x512xf32, #tpu.memory_space<vmem>>) attributes {dimension_semantics = [#tpu.dimension_semantics<parallel>], iteration_bounds = array<i64: 1>, scalar_prefetch = 0 : i64, scratch_operands = 0 : i64, tpu.core_type = #tpu.core_type<tc>, window_params = [{transform_indices = @transform_0, window_bounds = array<i64: 16, 1024>}, {pipeline_mode = #tpu.pipeline_mode<synchronous>, transform_indices = @transform_1, window_bounds = array<i64: 1024, 512>}, {pipeline_mode = #tpu.pipeline_mode<synchronous>, transform_indices = @transform_2, window_bounds = array<i64: 1, 512>}, {pipeline_mode = #tpu.pipeline_mode<synchronous>, transform_indices = @transform_3, window_bounds = array<i64: 512, 128>}, {pipeline_mode = #tpu.pipeline_mode<synchronous>, transform_indices = @transform_4, window_bounds = array<i64: 1, 128>}, {pipeline_mode = #tpu.pipeline_mode<synchronous>, transform_indices = @transform_5, window_bounds = array<i64: 128, 128>}, {pipeline_mode = #tpu.pipeline_mode<synchronous>, transform_indices = @transform_6, window_bounds = array<i64: 1, 128>}, {pipeline_mode = #tpu.pipeline_mode<synchronous>, transform_indices = @transform_7, window_bounds = array<i64: 128, 128>}, {pipeline_mode = #tpu.pipeline_mode<synchronous>, transform_indices = @transform_8, window_bounds = array<i64: 1, 128>}, {pipeline_mode = #tpu.pipeline_mode<synchronous>, transform_indices = @transform_9, window_bounds = array<i64: 128, 128>}, {pipeline_mode = #tpu.pipeline_mode<synchronous>, transform_indices = @transform_10, window_bounds = array<i64: 1, 128>}, {transform_indices = @transform_11, window_bounds = array<i64: 16, 128>}, {transform_indices = @transform_12, window_bounds = array<i64: 16, 512>}]} {
    %c0 = arith.constant 0 : index
    %c0_0 = arith.constant 0 : index
    %0 = vector.load %arg1[%c0, %c0_0] : memref<16x1024xf32, #tpu.memory_space<vmem>>, vector<16x1024xf32>
    %1 = arith.truncf %0 : vector<16x1024xf32> to vector<16x1024xbf16>
    %c0_1 = arith.constant 0 : index
    %c0_2 = arith.constant 0 : index
    %2 = vector.load %arg2[%c0_1, %c0_2] : memref<1024x512xbf16, #tpu.memory_space<vmem>>, vector<1024x512xbf16>
    %cst = arith.constant dense<0.000000e+00> : vector<16x512xf32>
    %3 = tpu.matmul %1, %2, %cst {dimension_numbers = #tpu.dot_dimension_numbers<[1], [0], [0], [1], [0, 0, 1, 1], [], []>} : vector<16x1024xbf16>, vector<1024x512xbf16>, vector<16x512xf32> -> vector<16x512xf32>
    %c0_3 = arith.constant 0 : index
    %c0_4 = arith.constant 0 : index
    %4 = vector.load %arg3[%c0_3, %c0_4] : memref<1x512xf32, #tpu.memory_space<vmem>>, vector<1x512xf32>
    %5 = vector.broadcast %4 : vector<1x512xf32> to vector<16x512xf32>
    %6 = arith.addf %3, %5 : vector<16x512xf32>
    %c0_5 = arith.constant 0 : index
    %c0_6 = arith.constant 0 : index
    %7 = vector.load %arg13[%c0_5, %c0_6] : memref<16x512xf32, #tpu.memory_space<vmem>>, vector<16x512xf32>
    tpu.vector_store %arg13[%c0_5, %c0_6], %6 {strides = array<i32>} : memref<16x512xf32, #tpu.memory_space<vmem>>, vector<16x512xf32>,
    %8 = arith.truncf %6 : vector<16x512xf32> to vector<16x512xbf16>
    %c0_7 = arith.constant 0 : index
    %c0_8 = arith.constant 0 : index
    %9 = vector.load %arg4[%c0_7, %c0_8] : memref<512x128xbf16, #tpu.memory_space<vmem>>, vector<512x128xbf16>
    %cst_9 = arith.constant dense<0.000000e+00> : vector<16x128xf32>
    %10 = tpu.matmul %8, %9, %cst_9 {dimension_numbers = #tpu.dot_dimension_numbers<[1], [0], [0], [1], [0, 0, 1, 1], [], []>} : vector<16x512xbf16>, vector<512x128xbf16>, vector<16x128xf32> -> vector<16x128xf32>
    %c0_10 = arith.constant 0 : index
    %c0_11 = arith.constant 0 : index
    %11 = vector.load %arg5[%c0_10, %c0_11] : memref<1x128xf32, #tpu.memory_space<vmem>>, vector<1x128xf32>
    %12 = vector.broadcast %11 : vector<1x128xf32> to vector<16x128xf32>
    %13 = arith.addf %10, %12 : vector<16x128xf32>
    %cst_12 = arith.constant 0.000000e+00 : f32
    %14 = vector.broadcast %cst_12 : f32 to vector<16x128xf32>
    %15 = arith.maximumf %13, %14 : vector<16x128xf32>
    %16 = arith.truncf %15 : vector<16x128xf32> to vector<16x128xbf16>
    %c0_13 = arith.constant 0 : index
    %c0_14 = arith.constant 0 : index
    %17 = vector.load %arg6[%c0_13, %c0_14] : memref<128x128xbf16, #tpu.memory_space<vmem>>, vector<128x128xbf16>
    %cst_15 = arith.constant dense<0.000000e+00> : vector<16x128xf32>
    %18 = tpu.matmul %16, %17, %cst_15 {dimension_numbers = #tpu.dot_dimension_numbers<[1], [0], [0], [1], [0, 0, 1, 1], [], []>} : vector<16x128xbf16>, vector<128x128xbf16>, vector<16x128xf32> -> vector<16x128xf32>
    %c0_16 = arith.constant 0 : index
    %c0_17 = arith.constant 0 : index
    %19 = vector.load %arg7[%c0_16, %c0_17] : memref<1x128xf32, #tpu.memory_space<vmem>>, vector<1x128xf32>
    %20 = vector.broadcast %19 : vector<1x128xf32> to vector<16x128xf32>
    %21 = arith.addf %18, %20 : vector<16x128xf32>
    %cst_18 = arith.constant 0.000000e+00 : f32
    %22 = vector.broadcast %cst_18 : f32 to vector<16x128xf32>
    %23 = arith.maximumf %21, %22 : vector<16x128xf32>
    %24 = arith.truncf %23 : vector<16x128xf32> to vector<16x128xbf16>
    %c0_19 = arith.constant 0 : index
    %c0_20 = arith.constant 0 : index
    %25 = vector.load %arg8[%c0_19, %c0_20] : memref<128x128xbf16, #tpu.memory_space<vmem>>, vector<128x128xbf16>
    %cst_21 = arith.constant dense<0.000000e+00> : vector<16x128xf32>
    %26 = tpu.matmul %24, %25, %cst_21 {dimension_numbers = #tpu.dot_dimension_numbers<[1], [0], [0], [1], [0, 0, 1, 1], [], []>} : vector<16x128xbf16>, vector<128x128xbf16>, vector<16x128xf32> -> vector<16x128xf32>
    %c0_22 = arith.constant 0 : index
    %c0_23 = arith.constant 0 : index
    %27 = vector.load %arg9[%c0_22, %c0_23] : memref<1x128xf32, #tpu.memory_space<vmem>>, vector<1x128xf32>
    %28 = vector.broadcast %27 : vector<1x128xf32> to vector<16x128xf32>
    %29 = arith.addf %26, %28 : vector<16x128xf32>
    %cst_24 = arith.constant 0.000000e+00 : f32
    %30 = vector.broadcast %cst_24 : f32 to vector<16x128xf32>
    %31 = arith.maximumf %29, %30 : vector<16x128xf32>
    %32 = arith.truncf %31 : vector<16x128xf32> to vector<16x128xbf16>
    %c0_25 = arith.constant 0 : index
    %c0_26 = arith.constant 0 : index
    %33 = vector.load %arg10[%c0_25, %c0_26] : memref<128x128xbf16, #tpu.memory_space<vmem>>, vector<128x128xbf16>
    %cst_27 = arith.constant dense<0.000000e+00> : vector<16x128xf32>
    %34 = tpu.matmul %32, %33, %cst_27 {dimension_numbers = #tpu.dot_dimension_numbers<[1], [0], [0], [1], [0, 0, 1, 1], [], []>} : vector<16x128xbf16>, vector<128x128xbf16>, vector<16x128xf32> -> vector<16x128xf32>
    %c0_28 = arith.constant 0 : index
    %c0_29 = arith.constant 0 : index
    %35 = vector.load %arg11[%c0_28, %c0_29] : memref<1x128xf32, #tpu.memory_space<vmem>>, vector<1x128xf32>
    %36 = vector.broadcast %35 : vector<1x128xf32> to vector<16x128xf32>
    %37 = arith.addf %34, %36 : vector<16x128xf32>
    %c0_30 = arith.constant 0 : index
    %c0_31 = arith.constant 0 : index
    %38 = vector.load %arg12[%c0_30, %c0_31] : memref<16x128xf32, #tpu.memory_space<vmem>>, vector<16x128xf32>
    tpu.vector_store %arg12[%c0_30, %c0_31], %37 {strides = array<i32>} : memref<16x128xf32, #tpu.memory_space<vmem>>, vector<16x128xf32>,
    return
  }
  func.func @transform_0(%arg0: i32) -> (i32, i32) {
    %c0_i32 = arith.constant 0 : i32
    %c0_i32_0 = arith.constant 0 : i32
    return %arg0, %c0_i32 : i32, i32
  }
  func.func @transform_1(%arg0: i32) -> (i32, i32) {
    %c0_i32 = arith.constant 0 : i32
    %c0_i32_0 = arith.constant 0 : i32
    %c0_i32_1 = arith.constant 0 : i32
    return %c0_i32, %c0_i32_0 : i32, i32
  }
  func.func @transform_2(%arg0: i32) -> (i32, i32) {
    %c0_i32 = arith.constant 0 : i32
    %c0_i32_0 = arith.constant 0 : i32
    %c0_i32_1 = arith.constant 0 : i32
    return %c0_i32, %c0_i32_0 : i32, i32
  }
  func.func @transform_3(%arg0: i32) -> (i32, i32) {
    %c0_i32 = arith.constant 0 : i32
    %c0_i32_0 = arith.constant 0 : i32
    %c0_i32_1 = arith.constant 0 : i32
    return %c0_i32, %c0_i32_0 : i32, i32
  }
  func.func @transform_4(%arg0: i32) -> (i32, i32) {
    %c0_i32 = arith.constant 0 : i32
    %c0_i32_0 = arith.constant 0 : i32
    %c0_i32_1 = arith.constant 0 : i32
    return %c0_i32, %c0_i32_0 : i32, i32
  }
  func.func @transform_5(%arg0: i32) -> (i32, i32) {
    %c0_i32 = arith.constant 0 : i32
    %c0_i32_0 = arith.constant 0 : i32
    %c0_i32_1 = arith.constant 0 : i32
    return %c0_i32, %c0_i32_0 : i32, i32
  }
  func.func @transform_6(%arg0: i32) -> (i32, i32) {
    %c0_i32 = arith.constant 0 : i32
    %c0_i32_0 = arith.constant 0 : i32
    %c0_i32_1 = arith.constant 0 : i32
    return %c0_i32, %c0_i32_0 : i32, i32
  }
  func.func @transform_7(%arg0: i32) -> (i32, i32) {
    %c0_i32 = arith.constant 0 : i32
    %c0_i32_0 = arith.constant 0 : i32
    %c0_i32_1 = arith.constant 0 : i32
    return %c0_i32, %c0_i32_0 : i32, i32
  }
  func.func @transform_8(%arg0: i32) -> (i32, i32) {
    %c0_i32 = arith.constant 0 : i32
    %c0_i32_0 = arith.constant 0 : i32
    %c0_i32_1 = arith.constant 0 : i32
    return %c0_i32, %c0_i32_0 : i32, i32
  }
  func.func @transform_9(%arg0: i32) -> (i32, i32) {
    %c0_i32 = arith.constant 0 : i32
    %c0_i32_0 = arith.constant 0 : i32
    %c0_i32_1 = arith.constant 0 : i32
    return %c0_i32, %c0_i32_0 : i32, i32
  }
  func.func @transform_10(%arg0: i32) -> (i32, i32) {
    %c0_i32 = arith.constant 0 : i32
    %c0_i32_0 = arith.constant 0 : i32
    %c0_i32_1 = arith.constant 0 : i32
    return %c0_i32, %c0_i32_0 : i32, i32
  }
  func.func @transform_11(%arg0: i32) -> (i32, i32) {
    %c0_i32 = arith.constant 0 : i32
    %c0_i32_0 = arith.constant 0 : i32
    return %arg0, %c0_i32 : i32, i32
  }
  func.func @transform_12(%arg0: i32) -> (i32, i32) {
    %c0_i32 = arith.constant 0 : i32
    %c0_i32_0 = arith.constant 0 : i32
    return %arg0, %c0_i32 : i32, i32
  }
}

</mosaic_0001>

<llo_original>
// kernel: tpu_custom_call.1
$region0: #{tpu_custom_call.1}
  #allocation0 [shape = 'u32[]', space=smem, size = 0x4, offset = 0x4, fixed_abs, tag = 'smem constant byte address 0x4 - core index']
  #allocation1 [shape = 'u32[144,128]{1,0:T(1,128)}', space=vmem, size = 0x12000, scoped, tag = 'internal scratch']
  %s0 = inlined_call_operand.hbm [shape: f32[16,128], index: 0, kind: input, shape index: {}]
  %s1 = inlined_call_operand.hbm [shape: f32[8,128], index: 1, kind: input, shape index: {}]
  %s2 = inlined_call_operand.hbm [shape: f32[16,128], index: 2, kind: output, shape index: {}]
  %s3 = sld [smem:[#allocation0]]
  $region49: #{tpu_custom_call.1} parent=0
    _
  %s5 = ssub.s32 1, %s3
  %s6 = scalar_select 0, %s5, %s3
  $region1: #{tpu_custom_call.1} parent=0
    #allocation2 [shape = 'u8[8192]{0}', space=vmem, size = 0x2000, scoped, tag = 'input window, operand 0']
    #allocation3 [shape = 's32[2]{0}', space=sflag, size = 0x8, scoped, tag = 'scoped memory for tpu_custom_call.1']
    #allocation4 [shape = 's32[2]{0}', space=sflag, size = 0x8, scoped, tag = 'scoped memory for tpu_custom_call.1']
    #allocation5 [shape = 'u8[4096]{0}', space=vmem, size = 0x1000, scoped, tag = 'input window, operand 1, single buffered']
    #allocation6 [shape = 's32[1]{0}', space=sflag, size = 0x4, scoped, tag = 'scoped memory for tpu_custom_call.1']
    #allocation7 [shape = 'u8[8192]{0}', space=vmem, size = 0x2000, scoped, tag = 'output window, operand 0']
    %7 = vsyncpa [#allocation3], 0
    %s8 = scalar_lea.sflag [#allocation3], 1
    %9 = vsyncpa %s8, 0
    %10 = vsyncpa [#allocation6], 0
    %11 = vsyncpa [#allocation4], 0
    %s12 = scalar_lea.sflag [#allocation4], 1
    %13 = vsyncpa %s12, 0
    loop: start=0, step=1, limit=4
    $region2: #{tpu_custom_call.1} parent=1 // loop_pre_header
      _
    $region3: #{tpu_custom_call.1} parent=1 // loop_header
      %s15 = sphi 0, %s19
      %p16 = scmp.ge.s32.totalorder %s15, 4
      %s25 = sphi 0, %s27
      %s28 = sphi 0, %s25
      %s29 = sphi 0, %s28
      %s45 = sphi 0, %s29
      %s49 = sphi 0, %s49
      %s51 = sphi 0, %s49
      %s52 = sphi 0, %s51
      %s66 = sphi 0, %s52
      %s72 = sphi 0, %s74
      %s75 = sphi 0, %s72
      %s76 = sphi 0, %s75
      %s92 = sphi 0, %s76
    $region4: #{tpu_custom_call.1} parent=1 // loop_header_branch
      %18 = sbr.rel (%p16) target = $region8
    $region5: #{tpu_custom_call.1} parent=1 // loop_body
      %s20 = ssub.s32 %s15, 1
      %s21 = ssub.s32 %s15, 2
      %s22 = sadd.s32 %s15, 1
      %s23 = ssub.s32 %s15, %s22
      %p24 = scmp.eq.s32.totalorder %s23, 0
      %s26 = sadd.s32 %s25, 1
      %s27 = scalar_select %p24, %s25, %s26
      %p30 = pneg %p24
      %p31 = scmp.eq.s32.totalorder %s15, 1
      %p32 = por %p30, %p31
      %p33 = scmp.ne.s32.totalorder %s25, %s28
      %p34 = scmp.eq.s32.totalorder %s15, 0
      %p35 = por %p33, %p34
      %p36 = scmp.ne.s32.totalorder %s25, %s28
      %p37 = scmp.eq.s32.totalorder %s20, 1
      %p38 = por %p36, %p37
      %p39 = scmp.ne.s32.totalorder %s28, %s29
      %p40 = scmp.eq.s32.totalorder %s20, 0
      %p41 = por %p39, %p40
      %p42 = scmp.ne.s32.totalorder %s28, %s29
      %p43 = scmp.eq.s32.totalorder %s21, 1
      %p44 = por %p42, %p43
      %p46 = scmp.ne.s32.totalorder %s29, %s45
      %p47 = scmp.eq.s32.totalorder %s21, 0
      %p48 = por %p46, %p47
      %s50 = sadd.s32 %s49, 1
      %p53 = scmp.eq.s32.totalorder %s15, 1
      %p54 = scmp.ne.s32.totalorder %s49, %s51
      %p55 = scmp.eq.s32.totalorder %s15, 0
      %p56 = por %p54, %p55
      %p57 = scmp.ne.s32.totalorder %s49, %s51
      %p58 = scmp.eq.s32.totalorder %s20, 1
      %p59 = por %p57, %p58
      %p60 = scmp.ne.s32.totalorder %s51, %s52
      %p61 = scmp.eq.s32.totalorder %s20, 0
      %p62 = por %p60, %p61
      %p63 = scmp.ne.s32.totalorder %s51, %s52
      %p64 = scmp.eq.s32.totalorder %s21, 1
      %p65 = por %p63, %p64
      %p67 = scmp.ne.s32.totalorder %s52, %s66
      %p68 = scmp.eq.s32.totalorder %s21, 0
      %p69 = por %p67, %p68
      %s70 = ssub.s32 %s15, %s22
      %p71 = scmp.eq.s32.totalorder %s70, 0
      %s73 = sadd.s32 %s72, 1
      %s74 = scalar_select %p71, %s72, %s73
      %p77 = pneg %p71
      %p78 = scmp.eq.s32.totalorder %s15, 1
      %p79 = por %p77, %p78
      %p80 = scmp.ne.s32.totalorder %s72, %s75
      %p81 = scmp.eq.s32.totalorder %s15, 0
      %p82 = por %p80, %p81
      %p83 = scmp.ne.s32.totalorder %s72, %s75
      %p84 = scmp.eq.s32.totalorder %s20, 1
      %p85 = por %p83, %p84
      %p86 = scmp.ne.s32.totalorder %s75, %s76
      %p87 = scmp.eq.s32.totalorder %s20, 0
      %p88 = por %p86, %p87
      %p89 = scmp.ne.s32.totalorder %s75, %s76
      %p90 = scmp.eq.s32.totalorder %s21, 1
      %p91 = por %p89, %p90
      %p93 = scmp.ne.s32.totalorder %s76, %s92
      %p94 = scmp.eq.s32.totalorder %s21, 0
      %p95 = por %p93, %p94
      %p96 = scmp.le.s32.totalorder 1, %s15
      %p97 = scmp.lt.s32.totalorder %s15, 3
      %p98 = pnand %p96, %p97
      %p99 = pneg %p98
      // Predicated region
      $region9: #{tpu_custom_call.1} parent=5 // pred_check
        _
      $region10: #{tpu_custom_call.1} parent=5 // pred_check_branch
        %101 = sbr.rel (%p98) target = $region12
      $region11: #{tpu_custom_call.1} parent=5 // pred_region
        %s102 = ssub.s32 %s15, 1
        // Predicated region
        $region13: #{tpu_custom_call.1} parent=11 // pred_check
          %p103 = pneg %p62
        $region14: #{tpu_custom_call.1} parent=11 // pred_check_branch
          %105 = sbr.rel (%p103) target = $region16
        $region15: #{tpu_custom_call.1} parent=11 // pred_region
          %s107 = ssub.s32 128, 128
          %108 = vsyncadd [#allocation6], %s107
          %s110 = sshll.u32 [#allocation5], 4
          %s111 = int_to_ptr.vmem [resolvable:$true] %s110
          %113 = dma.hbm_to_vmem [thread:$0]  %s1, 128, %s111, [#allocation6]
        $region16: #{tpu_custom_call.1} parent=11 // pred_fallthru
          _
      $region12: #{tpu_custom_call.1} parent=5 // pred_fallthru
        _
      %p114 = scmp.lt.s32.totalorder %s15, 2
      // Predicated region
      $region17: #{tpu_custom_call.1} parent=5 // pred_check
        %p115 = pneg %p114
      $region18: #{tpu_custom_call.1} parent=5 // pred_check_branch
        %117 = sbr.rel (%p115) target = $region20
      $region19: #{tpu_custom_call.1} parent=5 // pred_region
        // Predicated region
        $region21: #{tpu_custom_call.1} parent=19 // pred_check
          %p118 = pneg %p35
        $region22: #{tpu_custom_call.1} parent=19 // pred_check_branch
          %120 = sbr.rel (%p118) target = $region24
        $region23: #{tpu_custom_call.1} parent=19 // pred_region
          %s121 = sand.u32 %s25, 1
          %s122 = scalar_lea.sflag [#allocation3], %s121
          %s123 = sand.u32 %s25, 1
          %s124 = smul.addr %s123, 8
          %s125 = scalar_lea.vmem [#allocation2], %s124
          %s127 = ssub.s32 128, 128
          %128 = vsyncadd %s122, %s127
          %s129 = smul.addr %s15, 128
          %s130 = scalar_lea.hbm %s0, %s129
          %s132 = sshll.u32 %s125, 4
          %s133 = int_to_ptr.vmem [resolvable:$true] %s132
          %135 = dma.hbm_to_vmem [thread:$0]  %s130, 128, %s133, %s122
        $region24: #{tpu_custom_call.1} parent=19 // pred_fallthru
          _
      $region20: #{tpu_custom_call.1} parent=5 // pred_fallthru
        _
      %p136 = scmp.le.s32.totalorder 1, %s15
      %p137 = scmp.lt.s32.totalorder %s15, 3
      %p138 = pnand %p136, %p137
      %p139 = pneg %p138
      // Predicated region
      $region25: #{tpu_custom_call.1} parent=5 // pred_check
        _
      $region26: #{tpu_custom_call.1} parent=5 // pred_check_branch
        %141 = sbr.rel (%p138) target = $region28
      $region27: #{tpu_custom_call.1} parent=5 // pred_region
        %s142 = ssub.s32 %s15, 1
        %s143 = sand.u32 %s28, 1
        %s144 = scalar_lea.sflag [#allocation3], %s143
        %s145 = sand.u32 %s28, 1
        %s146 = smul.addr %s145, 8
        %s147 = scalar_lea.vmem [#allocation2], %s146
        // Predicated region
        $region29: #{tpu_custom_call.1} parent=27 // pred_check
          %p148 = pneg %p41
        $region30: #{tpu_custom_call.1} parent=27 // pred_check_branch
          %150 = sbr.rel (%p148) target = $region32
        $region31: #{tpu_custom_call.1} parent=27 // pred_region
          %151 = dma.done %s144, 128
        $region32: #{tpu_custom_call.1} parent=27 // pred_fallthru
          _
        // Predicated region
        $region33: #{tpu_custom_call.1} parent=27 // pred_check
          %p152 = pneg %p62
        $region34: #{tpu_custom_call.1} parent=27 // pred_check_branch
          %154 = sbr.rel (%p152) target = $region36
        $region35: #{tpu_custom_call.1} parent=27 // pred_region
          %155 = dma.done [#allocation6], 128
        $region36: #{tpu_custom_call.1} parent=27 // pred_fallthru
          _
        %s156 = sand.u32 %s28, 1
        %s157 = scalar_lea.sflag [#allocation3], %s156
        %s158 = sand.u32 %s28, 1
        %s159 = smul.addr %s158, 8
        %s160 = scalar_lea.vmem [#allocation2], %s159
        %p161 = pneg %p41
        %p162 = pneg %p38
        %p163 = pneg %p62
        %p164 = pneg %p59
        %p165 = pneg %p88
        %p166 = pneg %p85
        %s167 = sand.u32 %s75, 1
        %s168 = scalar_lea.sflag [#allocation4], %s167
        %s169 = sand.u32 %s75, 1
        %s170 = smul.addr %s169, 8
        %s171 = scalar_lea.vmem [#allocation7], %s170
        %v172 = vld [vmem:[%s147] sm:$0xff]
        %v173 = vld [vmem:[#allocation5] sm:$0xff]
        %v174 = vadd.f32 %v172, %v173
        %175 = vst [vmem:[%s171] sm:$0xff] %v174
        %s176 = sand.u32 %s75, 1
        %s177 = scalar_lea.sflag [#allocation4], %s176
        %s178 = sand.u32 %s75, 1
        %s179 = smul.addr %s178, 8
        %s180 = scalar_lea.vmem [#allocation7], %s179
        // Predicated region
        $region37: #{tpu_custom_call.1} parent=27 // pred_check
          %p181 = pneg %p85
        $region38: #{tpu_custom_call.1} parent=27 // pred_check_branch
          %183 = sbr.rel (%p181) target = $region40
        $region39: #{tpu_custom_call.1} parent=27 // pred_region
          %s185 = ssub.s32 128, 128
          %186 = vsyncadd %s177, %s185
          %s187 = smul.addr %s20, 128
          %s188 = scalar_lea.hbm %s2, %s187
          %s190 = sshll.u32 %s180, 4
          %s191 = int_to_ptr.vmem [resolvable:$true] %s190
          %193 = dma.vmem_to_hbm [thread:$0]  %s191, 128, %s188, %s177
        $region40: #{tpu_custom_call.1} parent=27 // pred_fallthru
          _
      $region28: #{tpu_custom_call.1} parent=5 // pred_fallthru
        _
      %p194 = scmp.le.s32.totalorder 2, %s15
      // Predicated region
      $region41: #{tpu_custom_call.1} parent=5 // pred_check
        %p195 = pneg %p194
      $region42: #{tpu_custom_call.1} parent=5 // pred_check_branch
        %197 = sbr.rel (%p195) target = $region44
      $region43: #{tpu_custom_call.1} parent=5 // pred_region
        %s198 = ssub.s32 %s15, 2
        // Predicated region
        $region45: #{tpu_custom_call.1} parent=43 // pred_check
          %p199 = pneg %p91
        $region46: #{tpu_custom_call.1} parent=43 // pred_check_branch
          %201 = sbr.rel (%p199) target = $region48
        $region47: #{tpu_custom_call.1} parent=43 // pred_region
          %s202 = sand.u32 %s76, 1
          %s203 = scalar_lea.sflag [#allocation4], %s202
          %s204 = sand.u32 %s76, 1
          %s205 = smul.addr %s204, 8
          %s206 = scalar_lea.vmem [#allocation7], %s205
          %207 = dma.done %s203, 128
        $region48: #{tpu_custom_call.1} parent=43 // pred_fallthru
          _
      $region44: #{tpu_custom_call.1} parent=5 // pred_fallthru
        _
    $region6: #{tpu_custom_call.1} parent=1 // loop_footer
      %s19 = sadd.s32 1, %s15
    $region7: #{tpu_custom_call.1} parent=1 // loop_footer_branch
      %14 = sbr.rel target = $region3
    $region8: #{tpu_custom_call.1} parent=1 // loop_exit
      _
    %208 = vsyncpa [#allocation3], 1
    %s209 = scalar_lea.sflag [#allocation3], 1
    %210 = vsyncpa %s209, 1
    %211 = vsyncpa [#allocation6], 1
    %212 = vsyncpa [#allocation4], 1
    %s213 = scalar_lea.sflag [#allocation4], 1
    %214 = vsyncpa %s213, 1

// kernel: sac_forward.1
$region0: #{sac_forward.1}
  #allocation0 [shape = 'u32[]', space=smem, size = 0x4, offset = 0x4, fixed_abs, tag = 'smem constant byte address 0x4 - core index']
  #allocation1 [shape = 'u32[144,128]{1,0:T(1,128)}', space=vmem, size = 0x12000, scoped, tag = 'internal scratch']
  %s0 = inlined_call_operand.vmem [shape: f32[16,1024], index: 0, kind: input, shape index: {}]
  %s1 = inlined_call_operand.vmem [shape: bf16[1024,512], index: 1, kind: input, shape index: {}]
  %s2 = inlined_call_operand.vmem [shape: f32[1,512], index: 2, kind: input, shape index: {}]
  %s3 = inlined_call_operand.vmem [shape: bf16[512,128], index: 3, kind: input, shape index: {}]
  %s4 = inlined_call_operand.vmem [shape: f32[1,128], index: 4, kind: input, shape index: {}]
  %s5 = inlined_call_operand.vmem [shape: bf16[128,128], index: 5, kind: input, shape index: {}]
  %s6 = inlined_call_operand.vmem [shape: f32[1,128], index: 6, kind: input, shape index: {}]
  %s7 = inlined_call_operand.vmem [shape: bf16[128,128], index: 7, kind: input, shape index: {}]
  %s8 = inlined_call_operand.vmem [shape: f32[1,128], index: 8, kind: input, shape index: {}]
  %s9 = inlined_call_operand.vmem [shape: bf16[128,128], index: 9, kind: input, shape index: {}]
  %s10 = inlined_call_operand.vmem [shape: f32[1,128], index: 10, kind: input, shape index: {}]
  %s11 = inlined_call_operand.vmem [shape: f32[16,128], index: 11, kind: output, shape index: {0}]
  %s12 = inlined_call_operand.vmem [shape: f32[16,512], index: 12, kind: output, shape index: {1}]
  %13 = xla_tuple %s11, %s12
  %s14 = sld [smem:[#allocation0]]
  $region62: #{sac_forward.1} parent=0
    _
  %s16 = ssub.s32 1, %s14
  %s17 = scalar_select 0, %s16, %s14
  // Predicated region
  $region2: #{sac_forward.1} parent=0 // pred_check
    _
  $region3: #{sac_forward.1} parent=0 // pred_check_branch
    %19 = sbr.rel (0) target = $region5
  $region4: #{sac_forward.1} parent=0 // pred_region
    _
  $region5: #{sac_forward.1} parent=0 // pred_fallthru
    _
  // Predicated region
  $region6: #{sac_forward.1} parent=0 // pred_check
    _
  $region7: #{sac_forward.1} parent=0 // pred_check_branch
    %21 = sbr.rel (0) target = $region9
  $region8: #{sac_forward.1} parent=0 // pred_region
    _
  $region9: #{sac_forward.1} parent=0 // pred_fallthru
    _
  // Predicated region
  $region10: #{sac_forward.1} parent=0 // pred_check
    _
  $region11: #{sac_forward.1} parent=0 // pred_check_branch
    %23 = sbr.rel (0) target = $region13
  $region12: #{sac_forward.1} parent=0 // pred_region
    _
  $region13: #{sac_forward.1} parent=0 // pred_fallthru
    _
  // Predicated region
  $region14: #{sac_forward.1} parent=0 // pred_check
    _
  $region15: #{sac_forward.1} parent=0 // pred_check_branch
    %25 = sbr.rel (0) target = $region17
  $region16: #{sac_forward.1} parent=0 // pred_region
    _
  $region17: #{sac_forward.1} parent=0 // pred_fallthru
    _
  // Predicated region
  $region18: #{sac_forward.1} parent=0 // pred_check
    _
  $region19: #{sac_forward.1} parent=0 // pred_check_branch
    %27 = sbr.rel (0) target = $region21
  $region20: #{sac_forward.1} parent=0 // pred_region
    _
  $region21: #{sac_forward.1} parent=0 // pred_fallthru
    _
  // Predicated region
  $region22: #{sac_forward.1} parent=0 // pred_check
    _
  $region23: #{sac_forward.1} parent=0 // pred_check_branch
    %29 = sbr.rel (0) target = $region25
  $region24: #{sac_forward.1} parent=0 // pred_region
    _
  $region25: #{sac_forward.1} parent=0 // pred_fallthru
    _
  // Predicated region
  $region26: #{sac_forward.1} parent=0 // pred_check
    _
  $region27: #{sac_forward.1} parent=0 // pred_check_branch
    %31 = sbr.rel (0) target = $region29
  $region28: #{sac_forward.1} parent=0 // pred_region
    _
  $region29: #{sac_forward.1} parent=0 // pred_fallthru
    _
  // Predicated region
  $region30: #{sac_forward.1} parent=0 // pred_check
    _
  $region31: #{sac_forward.1} parent=0 // pred_check_branch
    %33 = sbr.rel (0) target = $region33
  $region32: #{sac_forward.1} parent=0 // pred_region
    _
  $region33: #{sac_forward.1} parent=0 // pred_fallthru
    _
  // Predicated region
  $region34: #{sac_forward.1} parent=0 // pred_check
    _
  $region35: #{sac_forward.1} parent=0 // pred_check_branch
    %35 = sbr.rel (0) target = $region37
  $region36: #{sac_forward.1} parent=0 // pred_region
    _
  $region37: #{sac_forward.1} parent=0 // pred_fallthru
    _
  // Predicated region
  $region38: #{sac_forward.1} parent=0 // pred_check
    _
  $region39: #{sac_forward.1} parent=0 // pred_check_branch
    %37 = sbr.rel (0) target = $region41
  $region40: #{sac_forward.1} parent=0 // pred_region
    _
  $region41: #{sac_forward.1} parent=0 // pred_fallthru
    _
  // Predicated region
  $region42: #{sac_forward.1} parent=0 // pred_check
    _
  $region43: #{sac_forward.1} parent=0 // pred_check_branch
    %39 = sbr.rel (0) target = $region45
  $region44: #{sac_forward.1} parent=0 // pred_region
    _
  $region45: #{sac_forward.1} parent=0 // pred_fallthru
    _
  %v41 = vld [vmem:[%s0] sm:$0xff]
  %v42 = vld [vmem:[%s0 + $0x8] sm:$0xff]
  %v43 = vld [vmem:[%s0 + $0x10] sm:$0xff]
  %v44 = vld [vmem:[%s0 + $0x18] sm:$0xff]
  %v45 = vld [vmem:[%s0 + $0x20] sm:$0xff]
  %v46 = vld [vmem:[%s0 + $0x28] sm:$0xff]
  %v47 = vld [vmem:[%s0 + $0x30] sm:$0xff]
  %v48 = vld [vmem:[%s0 + $0x38] sm:$0xff]
  %v49 = vld [vmem:[%s0 + $0x40] sm:$0xff]
  %v50 = vld [vmem:[%s0 + $0x48] sm:$0xff]
  %v51 = vld [vmem:[%s0 + $0x50] sm:$0xff]
  %v52 = vld [vmem:[%s0 + $0x58] sm:$0xff]
  %v53 = vld [vmem:[%s0 + $0x60] sm:$0xff]
  %v54 = vld [vmem:[%s0 + $0x68] sm:$0xff]
  %v55 = vld [vmem:[%s0 + $0x70] sm:$0xff]
  %v56 = vld [vmem:[%s0 + $0x78] sm:$0xff]
  %v57 = vpack.c.bf16 %v49, %v41
  %v58 = vpack.c.bf16 %v50, %v42
  %v59 = vpack.c.bf16 %v51, %v43
  %v60 = vpack.c.bf16 %v52, %v44
  %v61 = vpack.c.bf16 %v53, %v45
  %v62 = vpack.c.bf16 %v54, %v46
  %v63 = vpack.c.bf16 %v55, %v47
  %v64 = vpack.c.bf16 %v56, %v48
  %v65 = vld [vmem:[%s1] sm:$0xff]
  %v66 = vld [vmem:[%s1 + $0x8] sm:$0xff]
  %v67 = vld [vmem:[%s1 + $0x10] sm:$0xff]
  %v68 = vld [vmem:[%s1 + $0x18] sm:$0xff]
  %v69 = vld [vmem:[%s1 + $0x20] sm:$0xff]
  %v70 = vld [vmem:[%s1 + $0x28] sm:$0xff]
  %v71 = vld [vmem:[%s1 + $0x30] sm:$0xff]
  %v72 = vld [vmem:[%s1 + $0x38] sm:$0xff]
  %v73 = vld [vmem:[%s1 + $0x40] sm:$0xff]
  %v74 = vld [vmem:[%s1 + $0x48] sm:$0xff]
  %v75 = vld [vmem:[%s1 + $0x50] sm:$0xff]
  %v76 = vld [vmem:[%s1 + $0x58] sm:$0xff]
  %v77 = vld [vmem:[%s1 + $0x60] sm:$0xff]
  %v78 = vld [vmem:[%s1 + $0x68] sm:$0xff]
  %v79 = vld [vmem:[%s1 + $0x70] sm:$0xff]
  %v80 = vld [vmem:[%s1 + $0x78] sm:$0xff]
  %v81 = vld [vmem:[%s1 + $0x80] sm:$0xff]
  %v82 = vld [vmem:[%s1 + $0x88] sm:$0xff]
  %v83 = vld [vmem:[%s1 + $0x90] sm:$0xff]
  %v84 = vld [vmem:[%s1 + $0x98] sm:$0xff]
  %v85 = vld [vmem:[%s1 + $0xa0] sm:$0xff]
  %v86 = vld [vmem:[%s1 + $0xa8] sm:$0xff]
  %v87 = vld [vmem:[%s1 + $0xb0] sm:$0xff]
  %v88 = vld [vmem:[%s1 + $0xb8] sm:$0xff]
  %v89 = vld [vmem:[%s1 + $0xc0] sm:$0xff]
  %v90 = vld [vmem:[%s1 + $0xc8] sm:$0xff]
  %v91 = vld [vmem:[%s1 + $0xd0] sm:$0xff]
  %v92 = vld [vmem:[%s1 + $0xd8] sm:$0xff]
  %v93 = vld [vmem:[%s1 + $0xe0] sm:$0xff]
  %v94 = vld [vmem:[%s1 + $0xe8] sm:$0xff]
  %v95 = vld [vmem:[%s1 + $0xf0] sm:$0xff]
  %v96 = vld [vmem:[%s1 + $0xf8] sm:$0xff]
  %v97 = vld [vmem:[%s1 + $0x100] sm:$0xff]
  %v98 = vld [vmem:[%s1 + $0x108] sm:$0xff]
  %v99 = vld [vmem:[%s1 + $0x110] sm:$0xff]
  %v100 = vld [vmem:[%s1 + $0x118] sm:$0xff]
  %v101 = vld [vmem:[%s1 + $0x120] sm:$0xff]
  %v102 = vld [vmem:[%s1 + $0x128] sm:$0xff]
  %v103 = vld [vmem:[%s1 + $0x130] sm:$0xff]
  %v104 = vld [vmem:[%s1 + $0x138] sm:$0xff]
  %v105 = vld [vmem:[%s1 + $0x140] sm:$0xff]
  %v106 = vld [vmem:[%s1 + $0x148] sm:$0xff]
  %v107 = vld [vmem:[%s1 + $0x150] sm:$0xff]
  %v108 = vld [vmem:[%s1 + $0x158] sm:$0xff]
  %v109 = vld [vmem:[%s1 + $0x160] sm:$0xff]
  %v110 = vld [vmem:[%s1 + $0x168] sm:$0xff]
  %v111 = vld [vmem:[%s1 + $0x170] sm:$0xff]
  %v112 = vld [vmem:[%s1 + $0x178] sm:$0xff]
  %v113 = vld [vmem:[%s1 + $0x180] sm:$0xff]
  %v114 = vld [vmem:[%s1 + $0x188] sm:$0xff]
  %v115 = vld [vmem:[%s1 + $0x190] sm:$0xff]
  %v116 = vld [vmem:[%s1 + $0x198] sm:$0xff]
  %v117 = vld [vmem:[%s1 + $0x1a0] sm:$0xff]
  %v118 = vld [vmem:[%s1 + $0x1a8] sm:$0xff]
  %v119 = vld [vmem:[%s1 + $0x1b0] sm:$0xff]
  %v120 = vld [vmem:[%s1 + $0x1b8] sm:$0xff]
  %v121 = vld [vmem:[%s1 + $0x1c0] sm:$0xff]
  %v122 = vld [vmem:[%s1 + $0x1c8] sm:$0xff]
  %v123 = vld [vmem:[%s1 + $0x1d0] sm:$0xff]
  %v124 = vld [vmem:[%s1 + $0x1d8] sm:$0xff]
  %v125 = vld [vmem:[%s1 + $0x1e0] sm:$0xff]
  %v126 = vld [vmem:[%s1 + $0x1e8] sm:$0xff]
  %v127 = vld [vmem:[%s1 + $0x1f0] sm:$0xff]
  %v128 = vld [vmem:[%s1 + $0x1f8] sm:$0xff]
  %v129 = vld [vmem:[%s1 + $0x200] sm:$0xff]
  %v130 = vld [vmem:[%s1 + $0x208] sm:$0xff]
  %v131 = vld [vmem:[%s1 + $0x210] sm:$0xff]
  %v132 = vld [vmem:[%s1 + $0x218] sm:$0xff]
  %v133 = vld [vmem:[%s1 + $0x220] sm:$0xff]
  %v134 = vld [vmem:[%s1 + $0x228] sm:$0xff]
  %v135 = vld [vmem:[%s1 + $0x230] sm:$0xff]
  %v136 = vld [vmem:[%s1 + $0x238] sm:$0xff]
  %v137 = vld [vmem:[%s1 + $0x240] sm:$0xff]
  %v138 = vld [vmem:[%s1 + $0x248] sm:$0xff]
  %v139 = vld [vmem:[%s1 + $0x250] sm:$0xff]
  %v140 = vld [vmem:[%s1 + $0x258] sm:$0xff]
  %v141 = vld [vmem:[%s1 + $0x260] sm:$0xff]
  %v142 = vld [vmem:[%s1 + $0x268] sm:$0xff]
  %v143 = vld [vmem:[%s1 + $0x270] sm:$0xff]
  %v144 = vld [vmem:[%s1 + $0x278] sm:$0xff]
  %v145 = vld [vmem:[%s1 + $0x280] sm:$0xff]
  %v146 = vld [vmem:[%s1 + $0x288] sm:$0xff]
  %v147 = vld [vmem:[%s1 + $0x290] sm:$0xff]
  %v148 = vld [vmem:[%s1 + $0x298] sm:$0xff]
  %v149 = vld [vmem:[%s1 + $0x2a0] sm:$0xff]
  %v150 = vld [vmem:[%s1 + $0x2a8] sm:$0xff]
  %v151 = vld [vmem:[%s1 + $0x2b0] sm:$0xff]
  %v152 = vld [vmem:[%s1 + $0x2b8] sm:$0xff]
  %v153 = vld [vmem:[%s1 + $0x2c0] sm:$0xff]
  %v154 = vld [vmem:[%s1 + $0x2c8] sm:$0xff]
  %v155 = vld [vmem:[%s1 + $0x2d0] sm:$0xff]
  %v156 = vld [vmem:[%s1 + $0x2d8] sm:$0xff]
  %v157 = vld [vmem:[%s1 + $0x2e0] sm:$0xff]
  %v158 = vld [vmem:[%s1 + $0x2e8] sm:$0xff]
  %v159 = vld [vmem:[%s1 + $0x2f0] sm:$0xff]
  %v160 = vld [vmem:[%s1 + $0x2f8] sm:$0xff]
  %v161 = vld [vmem:[%s1 + $0x300] sm:$0xff]
  %v162 = vld [vmem:[%s1 + $0x308] sm:$0xff]
  %v163 = vld [vmem:[%s1 + $0x310] sm:$0xff]
  %v164 = vld [vmem:[%s1 + $0x318] sm:$0xff]
  %v165 = vld [vmem:[%s1 + $0x320] sm:$0xff]
  %v166 = vld [vmem:[%s1 + $0x328] sm:$0xff]
  %v167 = vld [vmem:[%s1 + $0x330] sm:$0xff]
  %v168 = vld [vmem:[%s1 + $0x338] sm:$0xff]
  %v169 = vld [vmem:[%s1 + $0x340] sm:$0xff]
  %v170 = vld [vmem:[%s1 + $0x348] sm:$0xff]
  %v171 = vld [vmem:[%s1 + $0x350] sm:$0xff]
  %v172 = vld [vmem:[%s1 + $0x358] sm:$0xff]
  %v173 = vld [vmem:[%s1 + $0x360] sm:$0xff]
  %v174 = vld [vmem:[%s1 + $0x368] sm:$0xff]
  %v175 = vld [vmem:[%s1 + $0x370] sm:$0xff]
  %v176 = vld [vmem:[%s1 + $0x378] sm:$0xff]
  %v177 = vld [vmem:[%s1 + $0x380] sm:$0xff]
  %v178 = vld [vmem:[%s1 + $0x388] sm:$0xff]
  %v179 = vld [vmem:[%s1 + $0x390] sm:$0xff]
  %v180 = vld [vmem:[%s1 + $0x398] sm:$0xff]
  %v181 = vld [vmem:[%s1 + $0x3a0] sm:$0xff]
  %v182 = vld [vmem:[%s1 + $0x3a8] sm:$0xff]
  %v183 = vld [vmem:[%s1 + $0x3b0] sm:$0xff]
  %v184 = vld [vmem:[%s1 + $0x3b8] sm:$0xff]
  %v185 = vld [vmem:[%s1 + $0x3c0] sm:$0xff]
  %v186 = vld [vmem:[%s1 + $0x3c8] sm:$0xff]
  %v187 = vld [vmem:[%s1 + $0x3d0] sm:$0xff]
  %v188 = vld [vmem:[%s1 + $0x3d8] sm:$0xff]
  %v189 = vld [vmem:[%s1 + $0x3e0] sm:$0xff]
  %v190 = vld [vmem:[%s1 + $0x3e8] sm:$0xff]
  %v191 = vld [vmem:[%s1 + $0x3f0] sm:$0xff]
  %v192 = vld [vmem:[%s1 + $0x3f8] sm:$0xff]
  %v193 = vld [vmem:[%s1 + $0x400] sm:$0xff]
  %v194 = vld [vmem:[%s1 + $0x408] sm:$0xff]
  %v195 = vld [vmem:[%s1 + $0x410] sm:$0xff]
  %v196 = vld [vmem:[%s1 + $0x418] sm:$0xff]
  %v197 = vld [vmem:[%s1 + $0x420] sm:$0xff]
  %v198 = vld [vmem:[%s1 + $0x428] sm:$0xff]
  %v199 = vld [vmem:[%s1 + $0x430] sm:$0xff]
  %v200 = vld [vmem:[%s1 + $0x438] sm:$0xff]
  %v201 = vld [vmem:[%s1 + $0x440] sm:$0xff]
  %v202 = vld [vmem:[%s1 + $0x448] sm:$0xff]
  %v203 = vld [vmem:[%s1 + $0x450] sm:$0xff]
  %v204 = vld [vmem:[%s1 + $0x458] sm:$0xff]
  %v205 = vld [vmem:[%s1 + $0x460] sm:$0xff]
  %v206 = vld [vmem:[%s1 + $0x468] sm:$0xff]
  %v207 = vld [vmem:[%s1 + $0x470] sm:$0xff]
  %v208 = vld [vmem:[%s1 + $0x478] sm:$0xff]
  %v209 = vld [vmem:[%s1 + $0x480] sm:$0xff]
  %v210 = vld [vmem:[%s1 + $0x488] sm:$0xff]
  %v211 = vld [vmem:[%s1 + $0x490] sm:$0xff]
  %v212 = vld [vmem:[%s1 + $0x498] sm:$0xff]
  %v213 = vld [vmem:[%s1 + $0x4a0] sm:$0xff]
  %v214 = vld [vmem:[%s1 + $0x4a8] sm:$0xff]
  %v215 = vld [vmem:[%s1 + $0x4b0] sm:$0xff]
  %v216 = vld [vmem:[%s1 + $0x4b8] sm:$0xff]
  %v217 = vld [vmem:[%s1 + $0x4c0] sm:$0xff]
  %v218 = vld [vmem:[%s1 + $0x4c8] sm:$0xff]
  %v219 = vld [vmem:[%s1 + $0x4d0] sm:$0xff]
  %v220 = vld [vmem:[%s1 + $0x4d8] sm:$0xff]
  %v221 = vld [vmem:[%s1 + $0x4e0] sm:$0xff]
  %v222 = vld [vmem:[%s1 + $0x4e8] sm:$0xff]
  %v223 = vld [vmem:[%s1 + $0x4f0] sm:$0xff]
  %v224 = vld [vmem:[%s1 + $0x4f8] sm:$0xff]
  %v225 = vld [vmem:[%s1 + $0x500] sm:$0xff]
  %v226 = vld [vmem:[%s1 + $0x508] sm:$0xff]
  %v227 = vld [vmem:[%s1 + $0x510] sm:$0xff]
  %v228 = vld [vmem:[%s1 + $0x518] sm:$0xff]
  %v229 = vld [vmem:[%s1 + $0x520] sm:$0xff]
  %v230 = vld [vmem:[%s1 + $0x528] sm:$0xff]
  %v231 = vld [vmem:[%s1 + $0x530] sm:$0xff]
  %v232 = vld [vmem:[%s1 + $0x538] sm:$0xff]
  %v233 = vld [vmem:[%s1 + $0x540] sm:$0xff]
  %v234 = vld [vmem:[%s1 + $0x548] sm:$0xff]
  %v235 = vld [vmem:[%s1 + $0x550] sm:$0xff]
  %v236 = vld [vmem:[%s1 + $0x558] sm:$0xff]
  %v237 = vld [vmem:[%s1 + $0x560] sm:$0xff]
  %v238 = vld [vmem:[%s1 + $0x568] sm:$0xff]
  %v239 = vld [vmem:[%s1 + $0x570] sm:$0xff]
  %v240 = vld [vmem:[%s1 + $0x578] sm:$0xff]
  %v241 = vld [vmem:[%s1 + $0x580] sm:$0xff]
  %v242 = vld [vmem:[%s1 + $0x588] sm:$0xff]
  %v243 = vld [vmem:[%s1 + $0x590] sm:$0xff]
  %v244 = vld [vmem:[%s1 + $0x598] sm:$0xff]
  %v245 = vld [vmem:[%s1 + $0x5a0] sm:$0xff]
  %v246 = vld [vmem:[%s1 + $0x5a8] sm:$0xff]
  %v247 = vld [vmem:[%s1 + $0x5b0] sm:$0xff]
  %v248 = vld [vmem:[%s1 + $0x5b8] sm:$0xff]
  %v249 = vld [vmem:[%s1 + $0x5c0] sm:$0xff]
  %v250 = vld [vmem:[%s1 + $0x5c8] sm:$0xff]
  %v251 = vld [vmem:[%s1 + $0x5d0] sm:$0xff]
  %v252 = vld [vmem:[%s1 + $0x5d8] sm:$0xff]
  %v253 = vld [vmem:[%s1 + $0x5e0] sm:$0xff]
  %v254 = vld [vmem:[%s1 + $0x5e8] sm:$0xff]
  %v255 = vld [vmem:[%s1 + $0x5f0] sm:$0xff]
  %v256 = vld [vmem:[%s1 + $0x5f8] sm:$0xff]
  %v257 = vld [vmem:[%s1 + $0x600] sm:$0xff]
  %v258 = vld [vmem:[%s1 + $0x608] sm:$0xff]
  %v259 = vld [vmem:[%s1 + $0x610] sm:$0xff]
  %v260 = vld [vmem:[%s1 + $0x618] sm:$0xff]
  %v261 = vld [vmem:[%s1 + $0x620] sm:$0xff]
  %v262 = vld [vmem:[%s1 + $0x628] sm:$0xff]
  %v263 = vld [vmem:[%s1 + $0x630] sm:$0xff]
  %v264 = vld [vmem:[%s1 + $0x638] sm:$0xff]
  %v265 = vld [vmem:[%s1 + $0x640] sm:$0xff]
  %v266 = vld [vmem:[%s1 + $0x648] sm:$0xff]
  %v267 = vld [vmem:[%s1 + $0x650] sm:$0xff]
  %v268 = vld [vmem:[%s1 + $0x658] sm:$0xff]
  %v269 = vld [vmem:[%s1 + $0x660] sm:$0xff]
  %v270 = vld [vmem:[%s1 + $0x668] sm:$0xff]
  %v271 = vld [vmem:[%s1 + $0x670] sm:$0xff]
  %v272 = vld [vmem:[%s1 + $0x678] sm:$0xff]
  %v273 = vld [vmem:[%s1 + $0x680] sm:$0xff]
  %v274 = vld [vmem:[%s1 + $0x688] sm:$0xff]
  %v275 = vld [vmem:[%s1 + $0x690] sm:$0xff]
  %v276 = vld [vmem:[%s1 + $0x698] sm:$0xff]
  %v277 = vld [vmem:[%s1 + $0x6a0] sm:$0xff]
  %v278 = vld [vmem:[%s1 + $0x6a8] sm:$0xff]
  %v279 = vld [vmem:[%s1 + $0x6b0] sm:$0xff]
  %v280 = vld [vmem:[%s1 + $0x6b8] sm:$0xff]
  %v281 = vld [vmem:[%s1 + $0x6c0] sm:$0xff]
  %v282 = vld [vmem:[%s1 + $0x6c8] sm:$0xff]
  %v283 = vld [vmem:[%s1 + $0x6d0] sm:$0xff]
  %v284 = vld [vmem:[%s1 + $0x6d8] sm:$0xff]
  %v285 = vld [vmem:[%s1 + $0x6e0] sm:$0xff]
  %v286 = vld [vmem:[%s1 + $0x6e8] sm:$0xff]
  %v287 = vld [vmem:[%s1 + $0x6f0] sm:$0xff]
  %v288 = vld [vmem:[%s1 + $0x6f8] sm:$0xff]
  %v289 = vld [vmem:[%s1 + $0x700] sm:$0xff]
  %v290 = vld [vmem:[%s1 + $0x708] sm:$0xff]
  %v291 = vld [vmem:[%s1 + $0x710] sm:$0xff]
  %v292 = vld [vmem:[%s1 + $0x718] sm:$0xff]
  %v293 = vld [vmem:[%s1 + $0x720] sm:$0xff]
  %v294 = vld [vmem:[%s1 + $0x728] sm:$0xff]
  %v295 = vld [vmem:[%s1 + $0x730] sm:$0xff]
  %v296 = vld [vmem:[%s1 + $0x738] sm:$0xff]
  %v297 = vld [vmem:[%s1 + $0x740] sm:$0xff]
  %v298 = vld [vmem:[%s1 + $0x748] sm:$0xff]
  %v299 = vld [vmem:[%s1 + $0x750] sm:$0xff]
  %v300 = vld [vmem:[%s1 + $0x758] sm:$0xff]
  %v301 = vld [vmem:[%s1 + $0x760] sm:$0xff]
  %v302 = vld [vmem:[%s1 + $0x768] sm:$0xff]
  %v303 = vld [vmem:[%s1 + $0x770] sm:$0xff]
  %v304 = vld [vmem:[%s1 + $0x778] sm:$0xff]
  %v305 = vld [vmem:[%s1 + $0x780] sm:$0xff]
  %v306 = vld [vmem:[%s1 + $0x788] sm:$0xff]
  %v307 = vld [vmem:[%s1 + $0x790] sm:$0xff]
  %v308 = vld [vmem:[%s1 + $0x798] sm:$0xff]
  %v309 = vld [vmem:[%s1 + $0x7a0] sm:$0xff]
  %v310 = vld [vmem:[%s1 + $0x7a8] sm:$0xff]
  %v311 = vld [vmem:[%s1 + $0x7b0] sm:$0xff]
  %v312 = vld [vmem:[%s1 + $0x7b8] sm:$0xff]
  %v313 = vld [vmem:[%s1 + $0x7c0] sm:$0xff]
  %v314 = vld [vmem:[%s1 + $0x7c8] sm:$0xff]
  %v315 = vld [vmem:[%s1 + $0x7d0] sm:$0xff]
  %v316 = vld [vmem:[%s1 + $0x7d8] sm:$0xff]
  %v317 = vld [vmem:[%s1 + $0x7e0] sm:$0xff]
  %v318 = vld [vmem:[%s1 + $0x7e8] sm:$0xff]
  %v319 = vld [vmem:[%s1 + $0x7f0] sm:$0xff]
  %v320 = vld [vmem:[%s1 + $0x7f8] sm:$0xff]
  %v321 = vld [vmem:[%s2] sm:$0xf]
  %v323 = vlaneseq
  %v324 = vshrl.u32 %v323, 7
  %v325 = vsub.s32 0, %v324
  %v326 = vrot.slane %v321, %v325
  %v327 = vlaneseq
  %v328 = vshrl.u32 %v327, 7
  %v329 = vsub.s32 1, %v328
  %v330 = vrot.slane %v321, %v329
  %v331 = vlaneseq
  %v332 = vshrl.u32 %v331, 7
  %v333 = vsub.s32 2, %v332
  %v334 = vrot.slane %v321, %v333
  %v335 = vlaneseq
  %v336 = vshrl.u32 %v335, 7
  %v337 = vsub.s32 3, %v336
  %v338 = vrot.slane %v321, %v337
  %v599 = vunpack.c.l.b16 %v65
  %v600 = vunpack.c.h.b16 %v65
  %v601 = vunpack.c.l.b16 %v66
  %v602 = vunpack.c.h.b16 %v66
  %v603 = vunpack.c.l.b16 %v67
  %v604 = vunpack.c.h.b16 %v67
  %v605 = vunpack.c.l.b16 %v68
  %v606 = vunpack.c.h.b16 %v68
  %v607 = vunpack.c.l.b16 %v69
  %v608 = vunpack.c.h.b16 %v69
  %v609 = vunpack.c.l.b16 %v70
  %v610 = vunpack.c.h.b16 %v70
  %v611 = vunpack.c.l.b16 %v71
  %v612 = vunpack.c.h.b16 %v71
  %v613 = vunpack.c.l.b16 %v72
  %v614 = vunpack.c.h.b16 %v72
  %v615 = vunpack.c.l.b16 %v73
  %v616 = vunpack.c.h.b16 %v73
  %v617 = vunpack.c.l.b16 %v74
  %v618 = vunpack.c.h.b16 %v74
  %v619 = vunpack.c.l.b16 %v75
  %v620 = vunpack.c.h.b16 %v75
  %v621 = vunpack.c.l.b16 %v76
  %v622 = vunpack.c.h.b16 %v76
  %v623 = vunpack.c.l.b16 %v77
  %v624 = vunpack.c.h.b16 %v77
  %v625 = vunpack.c.l.b16 %v78
  %v626 = vunpack.c.h.b16 %v78
  %v627 = vunpack.c.l.b16 %v79
  %v628 = vunpack.c.h.b16 %v79
  %v629 = vunpack.c.l.b16 %v80
  %v630 = vunpack.c.h.b16 %v80
  %v631 = vunpack.c.l.b16 %v81
  %v632 = vunpack.c.h.b16 %v81
  %v633 = vunpack.c.l.b16 %v82
  %v634 = vunpack.c.h.b16 %v82
  %v635 = vunpack.c.l.b16 %v83
  %v636 = vunpack.c.h.b16 %v83
  %v637 = vunpack.c.l.b16 %v84
  %v638 = vunpack.c.h.b16 %v84
  %v639 = vunpack.c.l.b16 %v85
  %v640 = vunpack.c.h.b16 %v85
  %v641 = vunpack.c.l.b16 %v86
  %v642 = vunpack.c.h.b16 %v86
  %v643 = vunpack.c.l.b16 %v87
  %v644 = vunpack.c.h.b16 %v87
  %v645 = vunpack.c.l.b16 %v88
  %v646 = vunpack.c.h.b16 %v88
  %v647 = vunpack.c.l.b16 %v89
  %v648 = vunpack.c.h.b16 %v89
  %v649 = vunpack.c.l.b16 %v90
  %v650 = vunpack.c.h.b16 %v90
  %v651 = vunpack.c.l.b16 %v91
  %v652 = vunpack.c.h.b16 %v91
  %v653 = vunpack.c.l.b16 %v92
  %v654 = vunpack.c.h.b16 %v92
  %v655 = vunpack.c.l.b16 %v93
  %v656 = vunpack.c.h.b16 %v93
  %v657 = vunpack.c.l.b16 %v94
  %v658 = vunpack.c.h.b16 %v94
  %v659 = vunpack.c.l.b16 %v95
  %v660 = vunpack.c.h.b16 %v95
  %v661 = vunpack.c.l.b16 %v96
  %v662 = vunpack.c.h.b16 %v96
  %v663 = vunpack.c.l.b16 %v97
  %v664 = vunpack.c.h.b16 %v97
  %v665 = vunpack.c.l.b16 %v98
  %v666 = vunpack.c.h.b16 %v98
  %v667 = vunpack.c.l.b16 %v99
  %v668 = vunpack.c.h.b16 %v99
  %v669 = vunpack.c.l.b16 %v100
  %v670 = vunpack.c.h.b16 %v100
  %v671 = vunpack.c.l.b16 %v101
  %v672 = vunpack.c.h.b16 %v101
  %v673 = vunpack.c.l.b16 %v102
  %v674 = vunpack.c.h.b16 %v102
  %v675 = vunpack.c.l.b16 %v103
  %v676 = vunpack.c.h.b16 %v103
  %v677 = vunpack.c.l.b16 %v104
  %v678 = vunpack.c.h.b16 %v104
  %v679 = vunpack.c.l.b16 %v105
  %v680 = vunpack.c.h.b16 %v105
  %v681 = vunpack.c.l.b16 %v106
  %v682 = vunpack.c.h.b16 %v106
  %v683 = vunpack.c.l.b16 %v107
  %v684 = vunpack.c.h.b16 %v107
  %v685 = vunpack.c.l.b16 %v108
  %v686 = vunpack.c.h.b16 %v108
  %v687 = vunpack.c.l.b16 %v109
  %v688 = vunpack.c.h.b16 %v109
  %v689 = vunpack.c.l.b16 %v110
  %v690 = vunpack.c.h.b16 %v110
  %v691 = vunpack.c.l.b16 %v111
  %v692 = vunpack.c.h.b16 %v111
  %v693 = vunpack.c.l.b16 %v112
  %v694 = vunpack.c.h.b16 %v112
  %v695 = vunpack.c.l.b16 %v113
  %v696 = vunpack.c.h.b16 %v113
  %v697 = vunpack.c.l.b16 %v114
  %v698 = vunpack.c.h.b16 %v114
  %v699 = vunpack.c.l.b16 %v115
  %v700 = vunpack.c.h.b16 %v115
  %v701 = vunpack.c.l.b16 %v116
  %v702 = vunpack.c.h.b16 %v116
  %v703 = vunpack.c.l.b16 %v117
  %v704 = vunpack.c.h.b16 %v117
  %v705 = vunpack.c.l.b16 %v118
  %v706 = vunpack.c.h.b16 %v118
  %v707 = vunpack.c.l.b16 %v119
  %v708 = vunpack.c.h.b16 %v119
  %v709 = vunpack.c.l.b16 %v120
  %v710 = vunpack.c.h.b16 %v120
  %v711 = vunpack.c.l.b16 %v121
  %v712 = vunpack.c.h.b16 %v121
  %v713 = vunpack.c.l.b16 %v122
  %v714 = vunpack.c.h.b16 %v122
  %v715 = vunpack.c.l.b16 %v123
  %v716 = vunpack.c.h.b16 %v123
  %v717 = vunpack.c.l.b16 %v124
  %v718 = vunpack.c.h.b16 %v124
  %v719 = vunpack.c.l.b16 %v125
  %v720 = vunpack.c.h.b16 %v125
  %v721 = vunpack.c.l.b16 %v126
  %v722 = vunpack.c.h.b16 %v126
  %v723 = vunpack.c.l.b16 %v127
  %v724 = vunpack.c.h.b16 %v127
  %v725 = vunpack.c.l.b16 %v128
  %v726 = vunpack.c.h.b16 %v128
  %v727 = vunpack.c.l.b16 %v129
  %v728 = vunpack.c.h.b16 %v129
  %v729 = vunpack.c.l.b16 %v130
  %v730 = vunpack.c.h.b16 %v130
  %v731 = vunpack.c.l.b16 %v131
  %v732 = vunpack.c.h.b16 %v131
  %v733 = vunpack.c.l.b16 %v132
  %v734 = vunpack.c.h.b16 %v132
  %v735 = vunpack.c.l.b16 %v133
  %v736 = vunpack.c.h.b16 %v133
  %v737 = vunpack.c.l.b16 %v134
  %v738 = vunpack.c.h.b16 %v134
  %v739 = vunpack.c.l.b16 %v135
  %v740 = vunpack.c.h.b16 %v135
  %v741 = vunpack.c.l.b16 %v136
  %v742 = vunpack.c.h.b16 %v136
  %v743 = vunpack.c.l.b16 %v137
  %v744 = vunpack.c.h.b16 %v137
  %v745 = vunpack.c.l.b16 %v138
  %v746 = vunpack.c.h.b16 %v138
  %v747 = vunpack.c.l.b16 %v139
  %v748 = vunpack.c.h.b16 %v139
  %v749 = vunpack.c.l.b16 %v140
  %v750 = vunpack.c.h.b16 %v140
  %v751 = vunpack.c.l.b16 %v141
  %v752 = vunpack.c.h.b16 %v141
  %v753 = vunpack.c.l.b16 %v142
  %v754 = vunpack.c.h.b16 %v142
  %v755 = vunpack.c.l.b16 %v143
  %v756 = vunpack.c.h.b16 %v143
  %v757 = vunpack.c.l.b16 %v144
  %v758 = vunpack.c.h.b16 %v144
  %v759 = vunpack.c.l.b16 %v145
  %v760 = vunpack.c.h.b16 %v145
  %v761 = vunpack.c.l.b16 %v146
  %v762 = vunpack.c.h.b16 %v146
  %v763 = vunpack.c.l.b16 %v147
  %v764 = vunpack.c.h.b16 %v147
  %v765 = vunpack.c.l.b16 %v148
  %v766 = vunpack.c.h.b16 %v148
  %v767 = vunpack.c.l.b16 %v149
  %v768 = vunpack.c.h.b16 %v149
  %v769 = vunpack.c.l.b16 %v150
  %v770 = vunpack.c.h.b16 %v150
  %v771 = vunpack.c.l.b16 %v151
  %v772 = vunpack.c.h.b16 %v151
  %v773 = vunpack.c.l.b16 %v152
  %v774 = vunpack.c.h.b16 %v152
  %v775 = vunpack.c.l.b16 %v153
  %v776 = vunpack.c.h.b16 %v153
  %v777 = vunpack.c.l.b16 %v154
  %v778 = vunpack.c.h.b16 %v154
  %v779 = vunpack.c.l.b16 %v155
  %v780 = vunpack.c.h.b16 %v155
  %v781 = vunpack.c.l.b16 %v156
  %v782 = vunpack.c.h.b16 %v156
  %v783 = vunpack.c.l.b16 %v157
  %v784 = vunpack.c.h.b16 %v157
  %v785 = vunpack.c.l.b16 %v158
  %v786 = vunpack.c.h.b16 %v158
  %v787 = vunpack.c.l.b16 %v159
  %v788 = vunpack.c.h.b16 %v159
  %v789 = vunpack.c.l.b16 %v160
  %v790 = vunpack.c.h.b16 %v160
  %v791 = vunpack.c.l.b16 %v161
  %v792 = vunpack.c.h.b16 %v161
  %v793 = vunpack.c.l.b16 %v162
  %v794 = vunpack.c.h.b16 %v162
  %v795 = vunpack.c.l.b16 %v163
  %v796 = vunpack.c.h.b16 %v163
  %v797 = vunpack.c.l.b16 %v164
  %v798 = vunpack.c.h.b16 %v164
  %v799 = vunpack.c.l.b16 %v165
  %v800 = vunpack.c.h.b16 %v165
  %v801 = vunpack.c.l.b16 %v166
  %v802 = vunpack.c.h.b16 %v166
  %v803 = vunpack.c.l.b16 %v167
  %v804 = vunpack.c.h.b16 %v167
  %v805 = vunpack.c.l.b16 %v168
  %v806 = vunpack.c.h.b16 %v168
  %v807 = vunpack.c.l.b16 %v169
  %v808 = vunpack.c.h.b16 %v169
  %v809 = vunpack.c.l.b16 %v170
  %v810 = vunpack.c.h.b16 %v170
  %v811 = vunpack.c.l.b16 %v171
  %v812 = vunpack.c.h.b16 %v171
  %v813 = vunpack.c.l.b16 %v172
  %v814 = vunpack.c.h.b16 %v172
  %v815 = vunpack.c.l.b16 %v173
  %v816 = vunpack.c.h.b16 %v173
  %v817 = vunpack.c.l.b16 %v174
  %v818 = vunpack.c.h.b16 %v174
  %v819 = vunpack.c.l.b16 %v175
  %v820 = vunpack.c.h.b16 %v175
  %v821 = vunpack.c.l.b16 %v176
  %v822 = vunpack.c.h.b16 %v176
  %v823 = vunpack.c.l.b16 %v177
  %v824 = vunpack.c.h.b16 %v177
  %v825 = vunpack.c.l.b16 %v178
  %v826 = vunpack.c.h.b16 %v178
  %v827 = vunpack.c.l.b16 %v179
  %v828 = vunpack.c.h.b16 %v179
  %v829 = vunpack.c.l.b16 %v180
  %v830 = vunpack.c.h.b16 %v180
  %v831 = vunpack.c.l.b16 %v181
  %v832 = vunpack.c.h.b16 %v181
  %v833 = vunpack.c.l.b16 %v182
  %v834 = vunpack.c.h.b16 %v182
  %v835 = vunpack.c.l.b16 %v183
  %v836 = vunpack.c.h.b16 %v183
  %v837 = vunpack.c.l.b16 %v184
  %v838 = vunpack.c.h.b16 %v184
  %v839 = vunpack.c.l.b16 %v185
  %v840 = vunpack.c.h.b16 %v185
  %v841 = vunpack.c.l.b16 %v186
  %v842 = vunpack.c.h.b16 %v186
  %v843 = vunpack.c.l.b16 %v187
  %v844 = vunpack.c.h.b16 %v187
  %v845 = vunpack.c.l.b16 %v188
  %v846 = vunpack.c.h.b16 %v188
  %v847 = vunpack.c.l.b16 %v189
  %v848 = vunpack.c.h.b16 %v189
  %v849 = vunpack.c.l.b16 %v190
  %v850 = vunpack.c.h.b16 %v190
  %v851 = vunpack.c.l.b16 %v191
  %v852 = vunpack.c.h.b16 %v191
  %v853 = vunpack.c.l.b16 %v192
  %v854 = vunpack.c.h.b16 %v192
  %v855 = vunpack.c.l.b16 %v193
  %v856 = vunpack.c.h.b16 %v193
  %v857 = vunpack.c.l.b16 %v194
  %v858 = vunpack.c.h.b16 %v194
  %v859 = vunpack.c.l.b16 %v195
  %v860 = vunpack.c.h.b16 %v195
  %v861 = vunpack.c.l.b16 %v196
  %v862 = vunpack.c.h.b16 %v196
  %v863 = vunpack.c.l.b16 %v197
  %v864 = vunpack.c.h.b16 %v197
  %v865 = vunpack.c.l.b16 %v198
  %v866 = vunpack.c.h.b16 %v198
  %v867 = vunpack.c.l.b16 %v199
  %v868 = vunpack.c.h.b16 %v199
  %v869 = vunpack.c.l.b16 %v200
  %v870 = vunpack.c.h.b16 %v200
  %v871 = vunpack.c.l.b16 %v201
  %v872 = vunpack.c.h.b16 %v201
  %v873 = vunpack.c.l.b16 %v202
  %v874 = vunpack.c.h.b16 %v202
  %v875 = vunpack.c.l.b16 %v203
  %v876 = vunpack.c.h.b16 %v203
  %v877 = vunpack.c.l.b16 %v204
  %v878 = vunpack.c.h.b16 %v204
  %v879 = vunpack.c.l.b16 %v205
  %v880 = vunpack.c.h.b16 %v205
  %v881 = vunpack.c.l.b16 %v206
  %v882 = vunpack.c.h.b16 %v206
  %v883 = vunpack.c.l.b16 %v207
  %v884 = vunpack.c.h.b16 %v207
  %v885 = vunpack.c.l.b16 %v208
  %v886 = vunpack.c.h.b16 %v208
  %v887 = vunpack.c.l.b16 %v209
  %v888 = vunpack.c.h.b16 %v209
  %v889 = vunpack.c.l.b16 %v210
  %v890 = vunpack.c.h.b16 %v210
  %v891 = vunpack.c.l.b16 %v211
  %v892 = vunpack.c.h.b16 %v211
  %v893 = vunpack.c.l.b16 %v212
  %v894 = vunpack.c.h.b16 %v212
  %v895 = vunpack.c.l.b16 %v213
  %v896 = vunpack.c.h.b16 %v213
  %v897 = vunpack.c.l.b16 %v214
  %v898 = vunpack.c.h.b16 %v214
  %v899 = vunpack.c.l.b16 %v215
  %v900 = vunpack.c.h.b16 %v215
  %v901 = vunpack.c.l.b16 %v216
  %v902 = vunpack.c.h.b16 %v216
  %v903 = vunpack.c.l.b16 %v217
  %v904 = vunpack.c.h.b16 %v217
  %v905 = vunpack.c.l.b16 %v218
  %v906 = vunpack.c.h.b16 %v218
  %v907 = vunpack.c.l.b16 %v219
  %v908 = vunpack.c.h.b16 %v219
  %v909 = vunpack.c.l.b16 %v220
  %v910 = vunpack.c.h.b16 %v220
  %v911 = vunpack.c.l.b16 %v221
  %v912 = vunpack.c.h.b16 %v221
  %v913 = vunpack.c.l.b16 %v222
  %v914 = vunpack.c.h.b16 %v222
  %v915 = vunpack.c.l.b16 %v223
  %v916 = vunpack.c.h.b16 %v223
  %v917 = vunpack.c.l.b16 %v224
  %v918 = vunpack.c.h.b16 %v224
  %v919 = vunpack.c.l.b16 %v225
  %v920 = vunpack.c.h.b16 %v225
  %v921 = vunpack.c.l.b16 %v226
  %v922 = vunpack.c.h.b16 %v226
  %v923 = vunpack.c.l.b16 %v227
  %v924 = vunpack.c.h.b16 %v227
  %v925 = vunpack.c.l.b16 %v228
  %v926 = vunpack.c.h.b16 %v228
  %v927 = vunpack.c.l.b16 %v229
  %v928 = vunpack.c.h.b16 %v229
  %v929 = vunpack.c.l.b16 %v230
  %v930 = vunpack.c.h.b16 %v230
  %v931 = vunpack.c.l.b16 %v231
  %v932 = vunpack.c.h.b16 %v231
  %v933 = vunpack.c.l.b16 %v232
  %v934 = vunpack.c.h.b16 %v232
  %v935 = vunpack.c.l.b16 %v233
  %v936 = vunpack.c.h.b16 %v233
  %v937 = vunpack.c.l.b16 %v234
  %v938 = vunpack.c.h.b16 %v234
  %v939 = vunpack.c.l.b16 %v235
  %v940 = vunpack.c.h.b16 %v235
  %v941 = vunpack.c.l.b16 %v236
  %v942 = vunpack.c.h.b16 %v236
  %v943 = vunpack.c.l.b16 %v237
  %v944 = vunpack.c.h.b16 %v237
  %v945 = vunpack.c.l.b16 %v238
  %v946 = vunpack.c.h.b16 %v238
  %v947 = vunpack.c.l.b16 %v239
  %v948 = vunpack.c.h.b16 %v239
  %v949 = vunpack.c.l.b16 %v240
  %v950 = vunpack.c.h.b16 %v240
  %v951 = vunpack.c.l.b16 %v241
  %v952 = vunpack.c.h.b16 %v241
  %v953 = vunpack.c.l.b16 %v242
  %v954 = vunpack.c.h.b16 %v242
  %v955 = vunpack.c.l.b16 %v243
  %v956 = vunpack.c.h.b16 %v243
  %v957 = vunpack.c.l.b16 %v244
  %v958 = vunpack.c.h.b16 %v244
  %v959 = vunpack.c.l.b16 %v245
  %v960 = vunpack.c.h.b16 %v245
  %v961 = vunpack.c.l.b16 %v246
  %v962 = vunpack.c.h.b16 %v246
  %v963 = vunpack.c.l.b16 %v247
  %v964 = vunpack.c.h.b16 %v247
  %v965 = vunpack.c.l.b16 %v248
  %v966 = vunpack.c.h.b16 %v248
  %v967 = vunpack.c.l.b16 %v249
  %v968 = vunpack.c.h.b16 %v249
  %v969 = vunpack.c.l.b16 %v250
  %v970 = vunpack.c.h.b16 %v250
  %v971 = vunpack.c.l.b16 %v251
  %v972 = vunpack.c.h.b16 %v251
  %v973 = vunpack.c.l.b16 %v252
  %v974 = vunpack.c.h.b16 %v252
  %v975 = vunpack.c.l.b16 %v253
  %v976 = vunpack.c.h.b16 %v253
  %v977 = vunpack.c.l.b16 %v254
  %v978 = vunpack.c.h.b16 %v254
  %v979 = vunpack.c.l.b16 %v255
  %v980 = vunpack.c.h.b16 %v255
  %v981 = vunpack.c.l.b16 %v256
  %v982 = vunpack.c.h.b16 %v256
  %v983 = vunpack.c.l.b16 %v257
  %v984 = vunpack.c.h.b16 %v257
  %v985 = vunpack.c.l.b16 %v258
  %v986 = vunpack.c.h.b16 %v258
  %v987 = vunpack.c.l.b16 %v259
  %v988 = vunpack.c.h.b16 %v259
  %v989 = vunpack.c.l.b16 %v260
  %v990 = vunpack.c.h.b16 %v260
  %v991 = vunpack.c.l.b16 %v261
  %v992 = vunpack.c.h.b16 %v261
  %v993 = vunpack.c.l.b16 %v262
  %v994 = vunpack.c.h.b16 %v262
  %v995 = vunpack.c.l.b16 %v263
  %v996 = vunpack.c.h.b16 %v263
  %v997 = vunpack.c.l.b16 %v264
  %v998 = vunpack.c.h.b16 %v264
  %v999 = vunpack.c.l.b16 %v265
  %v1000 = vunpack.c.h.b16 %v265
  %v1001 = vunpack.c.l.b16 %v266
  %v1002 = vunpack.c.h.b16 %v266
  %v1003 = vunpack.c.l.b16 %v267
  %v1004 = vunpack.c.h.b16 %v267
  %v1005 = vunpack.c.l.b16 %v268
  %v1006 = vunpack.c.h.b16 %v268
  %v1007 = vunpack.c.l.b16 %v269
  %v1008 = vunpack.c.h.b16 %v269
  %v1009 = vunpack.c.l.b16 %v270
  %v1010 = vunpack.c.h.b16 %v270
  %v1011 = vunpack.c.l.b16 %v271
  %v1012 = vunpack.c.h.b16 %v271
  %v1013 = vunpack.c.l.b16 %v272
  %v1014 = vunpack.c.h.b16 %v272
  %v1015 = vunpack.c.l.b16 %v273
  %v1016 = vunpack.c.h.b16 %v273
  %v1017 = vunpack.c.l.b16 %v274
  %v1018 = vunpack.c.h.b16 %v274
  %v1019 = vunpack.c.l.b16 %v275
  %v1020 = vunpack.c.h.b16 %v275
  %v1021 = vunpack.c.l.b16 %v276
  %v1022 = vunpack.c.h.b16 %v276
  %v1023 = vunpack.c.l.b16 %v277
  %v1024 = vunpack.c.h.b16 %v277
  %v1025 = vunpack.c.l.b16 %v278
  %v1026 = vunpack.c.h.b16 %v278
  %v1027 = vunpack.c.l.b16 %v279
  %v1028 = vunpack.c.h.b16 %v279
  %v1029 = vunpack.c.l.b16 %v280
  %v1030 = vunpack.c.h.b16 %v280
  %v1031 = vunpack.c.l.b16 %v281
  %v1032 = vunpack.c.h.b16 %v281
  %v1033 = vunpack.c.l.b16 %v282
  %v1034 = vunpack.c.h.b16 %v282
  %v1035 = vunpack.c.l.b16 %v283
  %v1036 = vunpack.c.h.b16 %v283
  %v1037 = vunpack.c.l.b16 %v284
  %v1038 = vunpack.c.h.b16 %v284
  %v1039 = vunpack.c.l.b16 %v285
  %v1040 = vunpack.c.h.b16 %v285
  %v1041 = vunpack.c.l.b16 %v286
  %v1042 = vunpack.c.h.b16 %v286
  %v1043 = vunpack.c.l.b16 %v287
  %v1044 = vunpack.c.h.b16 %v287
  %v1045 = vunpack.c.l.b16 %v288
  %v1046 = vunpack.c.h.b16 %v288
  %v1047 = vunpack.c.l.b16 %v289
  %v1048 = vunpack.c.h.b16 %v289
  %v1049 = vunpack.c.l.b16 %v290
  %v1050 = vunpack.c.h.b16 %v290
  %v1051 = vunpack.c.l.b16 %v291
  %v1052 = vunpack.c.h.b16 %v291
  %v1053 = vunpack.c.l.b16 %v292
  %v1054 = vunpack.c.h.b16 %v292
  %v1055 = vunpack.c.l.b16 %v293
  %v1056 = vunpack.c.h.b16 %v293
  %v1057 = vunpack.c.l.b16 %v294
  %v1058 = vunpack.c.h.b16 %v294
  %v1059 = vunpack.c.l.b16 %v295
  %v1060 = vunpack.c.h.b16 %v295
  %v1061 = vunpack.c.l.b16 %v296
  %v1062 = vunpack.c.h.b16 %v296
  %v1063 = vunpack.c.l.b16 %v297
  %v1064 = vunpack.c.h.b16 %v297
  %v1065 = vunpack.c.l.b16 %v298
  %v1066 = vunpack.c.h.b16 %v298
  %v1067 = vunpack.c.l.b16 %v299
  %v1068 = vunpack.c.h.b16 %v299
  %v1069 = vunpack.c.l.b16 %v300
  %v1070 = vunpack.c.h.b16 %v300
  %v1071 = vunpack.c.l.b16 %v301
  %v1072 = vunpack.c.h.b16 %v301
  %v1073 = vunpack.c.l.b16 %v302
  %v1074 = vunpack.c.h.b16 %v302
  %v1075 = vunpack.c.l.b16 %v303
  %v1076 = vunpack.c.h.b16 %v303
  %v1077 = vunpack.c.l.b16 %v304
  %v1078 = vunpack.c.h.b16 %v304
  %v1079 = vunpack.c.l.b16 %v305
  %v1080 = vunpack.c.h.b16 %v305
  %v1081 = vunpack.c.l.b16 %v306
  %v1082 = vunpack.c.h.b16 %v306
  %v1083 = vunpack.c.l.b16 %v307
  %v1084 = vunpack.c.h.b16 %v307
  %v1085 = vunpack.c.l.b16 %v308
  %v1086 = vunpack.c.h.b16 %v308
  %v1087 = vunpack.c.l.b16 %v309
  %v1088 = vunpack.c.h.b16 %v309
  %v1089 = vunpack.c.l.b16 %v310
  %v1090 = vunpack.c.h.b16 %v310
  %v1091 = vunpack.c.l.b16 %v311
  %v1092 = vunpack.c.h.b16 %v311
  %v1093 = vunpack.c.l.b16 %v312
  %v1094 = vunpack.c.h.b16 %v312
  %v1095 = vunpack.c.l.b16 %v313
  %v1096 = vunpack.c.h.b16 %v313
  %v1097 = vunpack.c.l.b16 %v314
  %v1098 = vunpack.c.h.b16 %v314
  %v1099 = vunpack.c.l.b16 %v315
  %v1100 = vunpack.c.h.b16 %v315
  %v1101 = vunpack.c.l.b16 %v316
  %v1102 = vunpack.c.h.b16 %v316
  %v1103 = vunpack.c.l.b16 %v317
  %v1104 = vunpack.c.h.b16 %v317
  %v1105 = vunpack.c.l.b16 %v318
  %v1106 = vunpack.c.h.b16 %v318
  %v1107 = vunpack.c.l.b16 %v319
  %v1108 = vunpack.c.h.b16 %v319
  %v1109 = vunpack.c.l.b16 %v320
  %v1110 = vunpack.c.h.b16 %v320
  %v1111 = vpack.c.b16 %v603, %v599
  %v1112 = vpack.c.b16 %v604, %v600
  %v1113 = vpack.c.b16 %v605, %v601
  %v1114 = vpack.c.b16 %v606, %v602
  %v1115 = vpack.c.b16 %v611, %v607
  %v1116 = vpack.c.b16 %v612, %v608
  %v1117 = vpack.c.b16 %v613, %v609
  %v1118 = vpack.c.b16 %v614, %v610
  %v1119 = vpack.c.b16 %v619, %v615
  %v1120 = vpack.c.b16 %v620, %v616
  %v1121 = vpack.c.b16 %v621, %v617
  %v1122 = vpack.c.b16 %v622, %v618
  %v1123 = vpack.c.b16 %v627, %v623
  %v1124 = vpack.c.b16 %v628, %v624
  %v1125 = vpack.c.b16 %v629, %v625
  %v1126 = vpack.c.b16 %v630, %v626
  %v1127 = vpack.c.b16 %v635, %v631
  %v1128 = vpack.c.b16 %v636, %v632
  %v1129 = vpack.c.b16 %v637, %v633
  %v1130 = vpack.c.b16 %v638, %v634
  %v1131 = vpack.c.b16 %v643, %v639
  %v1132 = vpack.c.b16 %v644, %v640
  %v1133 = vpack.c.b16 %v645, %v641
  %v1134 = vpack.c.b16 %v646, %v642
  %v1135 = vpack.c.b16 %v651, %v647
  %v1136 = vpack.c.b16 %v652, %v648
  %v1137 = vpack.c.b16 %v653, %v649
  %v1138 = vpack.c.b16 %v654, %v650
  %v1139 = vpack.c.b16 %v659, %v655
  %v1140 = vpack.c.b16 %v660, %v656
  %v1141 = vpack.c.b16 %v661, %v657
  %v1142 = vpack.c.b16 %v662, %v658
  %v1143 = vpack.c.b16 %v667, %v663
  %v1144 = vpack.c.b16 %v668, %v664
  %v1145 = vpack.c.b16 %v669, %v665
  %v1146 = vpack.c.b16 %v670, %v666
  %v1147 = vpack.c.b16 %v675, %v671
  %v1148 = vpack.c.b16 %v676, %v672
  %v1149 = vpack.c.b16 %v677, %v673
  %v1150 = vpack.c.b16 %v678, %v674
  %v1151 = vpack.c.b16 %v683, %v679
  %v1152 = vpack.c.b16 %v684, %v680
  %v1153 = vpack.c.b16 %v685, %v681
  %v1154 = vpack.c.b16 %v686, %v682
  %v1155 = vpack.c.b16 %v691, %v687
  %v1156 = vpack.c.b16 %v692, %v688
  %v1157 = vpack.c.b16 %v693, %v689
  %v1158 = vpack.c.b16 %v694, %v690
  %v1159 = vpack.c.b16 %v699, %v695
  %v1160 = vpack.c.b16 %v700, %v696
  %v1161 = vpack.c.b16 %v701, %v697
  %v1162 = vpack.c.b16 %v702, %v698
  %v1163 = vpack.c.b16 %v707, %v703
  %v1164 = vpack.c.b16 %v708, %v704
  %v1165 = vpack.c.b16 %v709, %v705
  %v1166 = vpack.c.b16 %v710, %v706
  %v1167 = vpack.c.b16 %v715, %v711
  %v1168 = vpack.c.b16 %v716, %v712
  %v1169 = vpack.c.b16 %v717, %v713
  %v1170 = vpack.c.b16 %v718, %v714
  %v1171 = vpack.c.b16 %v723, %v719
  %v1172 = vpack.c.b16 %v724, %v720
  %v1173 = vpack.c.b16 %v725, %v721
  %v1174 = vpack.c.b16 %v726, %v722
  %v1175 = vpack.c.b16 %v731, %v727
  %v1176 = vpack.c.b16 %v732, %v728
  %v1177 = vpack.c.b16 %v733, %v729
  %v1178 = vpack.c.b16 %v734, %v730
  %v1179 = vpack.c.b16 %v739, %v735
  %v1180 = vpack.c.b16 %v740, %v736
  %v1181 = vpack.c.b16 %v741, %v737
  %v1182 = vpack.c.b16 %v742, %v738
  %v1183 = vpack.c.b16 %v747, %v743
  %v1184 = vpack.c.b16 %v748, %v744
  %v1185 = vpack.c.b16 %v749, %v745
  %v1186 = vpack.c.b16 %v750, %v746
  %v1187 = vpack.c.b16 %v755, %v751
  %v1188 = vpack.c.b16 %v756, %v752
  %v1189 = vpack.c.b16 %v757, %v753
  %v1190 = vpack.c.b16 %v758, %v754
  %v1191 = vpack.c.b16 %v763, %v759
  %v1192 = vpack.c.b16 %v764, %v760
  %v1193 = vpack.c.b16 %v765, %v761
  %v1194 = vpack.c.b16 %v766, %v762
  %v1195 = vpack.c.b16 %v771, %v767
  %v1196 = vpack.c.b16 %v772, %v768
  %v1197 = vpack.c.b16 %v773, %v769
  %v1198 = vpack.c.b16 %v774, %v770
  %v1199 = vpack.c.b16 %v779, %v775
  %v1200 = vpack.c.b16 %v780, %v776
  %v1201 = vpack.c.b16 %v781, %v777
  %v1202 = vpack.c.b16 %v782, %v778
  %v1203 = vpack.c.b16 %v787, %v783
  %v1204 = vpack.c.b16 %v788, %v784
  %v1205 = vpack.c.b16 %v789, %v785
  %v1206 = vpack.c.b16 %v790, %v786
  %v1207 = vpack.c.b16 %v795, %v791
  %v1208 = vpack.c.b16 %v796, %v792
  %v1209 = vpack.c.b16 %v797, %v793
  %v1210 = vpack.c.b16 %v798, %v794
  %v1211 = vpack.c.b16 %v803, %v799
  %v1212 = vpack.c.b16 %v804, %v800
  %v1213 = vpack.c.b16 %v805, %v801
  %v1214 = vpack.c.b16 %v806, %v802
  %v1215 = vpack.c.b16 %v811, %v807
  %v1216 = vpack.c.b16 %v812, %v808
  %v1217 = vpack.c.b16 %v813, %v809
  %v1218 = vpack.c.b16 %v814, %v810
  %v1219 = vpack.c.b16 %v819, %v815
  %v1220 = vpack.c.b16 %v820, %v816
  %v1221 = vpack.c.b16 %v821, %v817
  %v1222 = vpack.c.b16 %v822, %v818
  %v1223 = vpack.c.b16 %v827, %v823
  %v1224 = vpack.c.b16 %v828, %v824
  %v1225 = vpack.c.b16 %v829, %v825
  %v1226 = vpack.c.b16 %v830, %v826
  %v1227 = vpack.c.b16 %v835, %v831
  %v1228 = vpack.c.b16 %v836, %v832
  %v1229 = vpack.c.b16 %v837, %v833
  %v1230 = vpack.c.b16 %v838, %v834
  %v1231 = vpack.c.b16 %v843, %v839
  %v1232 = vpack.c.b16 %v844, %v840
  %v1233 = vpack.c.b16 %v845, %v841
  %v1234 = vpack.c.b16 %v846, %v842
  %v1235 = vpack.c.b16 %v851, %v847
  %v1236 = vpack.c.b16 %v852, %v848
  %v1237 = vpack.c.b16 %v853, %v849
  %v1238 = vpack.c.b16 %v854, %v850
  %v1239 = vpack.c.b16 %v859, %v855
  %v1240 = vpack.c.b16 %v860, %v856
  %v1241 = vpack.c.b16 %v861, %v857
  %v1242 = vpack.c.b16 %v862, %v858
  %v1243 = vpack.c.b16 %v867, %v863
  %v1244 = vpack.c.b16 %v868, %v864
  %v1245 = vpack.c.b16 %v869, %v865
  %v1246 = vpack.c.b16 %v870, %v866
  %v1247 = vpack.c.b16 %v875, %v871
  %v1248 = vpack.c.b16 %v876, %v872
  %v1249 = vpack.c.b16 %v877, %v873
  %v1250 = vpack.c.b16 %v878, %v874
  %v1251 = vpack.c.b16 %v883, %v879
  %v1252 = vpack.c.b16 %v884, %v880
  %v1253 = vpack.c.b16 %v885, %v881
  %v1254 = vpack.c.b16 %v886, %v882
  %v1255 = vpack.c.b16 %v891, %v887
  %v1256 = vpack.c.b16 %v892, %v888
  %v1257 = vpack.c.b16 %v893, %v889
  %v1258 = vpack.c.b16 %v894, %v890
  %v1259 = vpack.c.b16 %v899, %v895
  %v1260 = vpack.c.b16 %v900, %v896
  %v1261 = vpack.c.b16 %v901, %v897
  %v1262 = vpack.c.b16 %v902, %v898
  %v1263 = vpack.c.b16 %v907, %v903
  %v1264 = vpack.c.b16 %v908, %v904
  %v1265 = vpack.c.b16 %v909, %v905
  %v1266 = vpack.c.b16 %v910, %v906
  %v1267 = vpack.c.b16 %v915, %v911
  %v1268 = vpack.c.b16 %v916, %v912
  %v1269 = vpack.c.b16 %v917, %v913
  %v1270 = vpack.c.b16 %v918, %v914
  %v1271 = vpack.c.b16 %v923, %v919
  %v1272 = vpack.c.b16 %v924, %v920
  %v1273 = vpack.c.b16 %v925, %v921
  %v1274 = vpack.c.b16 %v926, %v922
  %v1275 = vpack.c.b16 %v931, %v927
  %v1276 = vpack.c.b16 %v932, %v928
  %v1277 = vpack.c.b16 %v933, %v929
  %v1278 = vpack.c.b16 %v934, %v930
  %v1279 = vpack.c.b16 %v939, %v935
  %v1280 = vpack.c.b16 %v940, %v936
  %v1281 = vpack.c.b16 %v941, %v937
  %v1282 = vpack.c.b16 %v942, %v938
  %v1283 = vpack.c.b16 %v947, %v943
  %v1284 = vpack.c.b16 %v948, %v944
  %v1285 = vpack.c.b16 %v949, %v945
  %v1286 = vpack.c.b16 %v950, %v946
  %v1287 = vpack.c.b16 %v955, %v951
  %v1288 = vpack.c.b16 %v956, %v952
  %v1289 = vpack.c.b16 %v957, %v953
  %v1290 = vpack.c.b16 %v958, %v954
  %v1291 = vpack.c.b16 %v963, %v959
  %v1292 = vpack.c.b16 %v964, %v960
  %v1293 = vpack.c.b16 %v965, %v961
  %v1294 = vpack.c.b16 %v966, %v962
  %v1295 = vpack.c.b16 %v971, %v967
  %v1296 = vpack.c.b16 %v972, %v968
  %v1297 = vpack.c.b16 %v973, %v969
  %v1298 = vpack.c.b16 %v974, %v970
  %v1299 = vpack.c.b16 %v979, %v975
  %v1300 = vpack.c.b16 %v980, %v976
  %v1301 = vpack.c.b16 %v981, %v977
  %v1302 = vpack.c.b16 %v982, %v978
  %v1303 = vpack.c.b16 %v987, %v983
  %v1304 = vpack.c.b16 %v988, %v984
  %v1305 = vpack.c.b16 %v989, %v985
  %v1306 = vpack.c.b16 %v990, %v986
  %v1307 = vpack.c.b16 %v995, %v991
  %v1308 = vpack.c.b16 %v996, %v992
  %v1309 = vpack.c.b16 %v997, %v993
  %v1310 = vpack.c.b16 %v998, %v994
  %v1311 = vpack.c.b16 %v1003, %v999
  %v1312 = vpack.c.b16 %v1004, %v1000
  %v1313 = vpack.c.b16 %v1005, %v1001
  %v1314 = vpack.c.b16 %v1006, %v1002
  %v1315 = vpack.c.b16 %v1011, %v1007
  %v1316 = vpack.c.b16 %v1012, %v1008
  %v1317 = vpack.c.b16 %v1013, %v1009
  %v1318 = vpack.c.b16 %v1014, %v1010
  %v1319 = vpack.c.b16 %v1019, %v1015
  %v1320 = vpack.c.b16 %v1020, %v1016
  %v1321 = vpack.c.b16 %v1021, %v1017
  %v1322 = vpack.c.b16 %v1022, %v1018
  %v1323 = vpack.c.b16 %v1027, %v1023
  %v1324 = vpack.c.b16 %v1028, %v1024
  %v1325 = vpack.c.b16 %v1029, %v1025
  %v1326 = vpack.c.b16 %v1030, %v1026
  %v1327 = vpack.c.b16 %v1035, %v1031
  %v1328 = vpack.c.b16 %v1036, %v1032
  %v1329 = vpack.c.b16 %v1037, %v1033
  %v1330 = vpack.c.b16 %v1038, %v1034
  %v1331 = vpack.c.b16 %v1043, %v1039
  %v1332 = vpack.c.b16 %v1044, %v1040
  %v1333 = vpack.c.b16 %v1045, %v1041
  %v1334 = vpack.c.b16 %v1046, %v1042
  %v1335 = vpack.c.b16 %v1051, %v1047
  %v1336 = vpack.c.b16 %v1052, %v1048
  %v1337 = vpack.c.b16 %v1053, %v1049
  %v1338 = vpack.c.b16 %v1054, %v1050
  %v1339 = vpack.c.b16 %v1059, %v1055
  %v1340 = vpack.c.b16 %v1060, %v1056
  %v1341 = vpack.c.b16 %v1061, %v1057
  %v1342 = vpack.c.b16 %v1062, %v1058
  %v1343 = vpack.c.b16 %v1067, %v1063
  %v1344 = vpack.c.b16 %v1068, %v1064
  %v1345 = vpack.c.b16 %v1069, %v1065
  %v1346 = vpack.c.b16 %v1070, %v1066
  %v1347 = vpack.c.b16 %v1075, %v1071
  %v1348 = vpack.c.b16 %v1076, %v1072
  %v1349 = vpack.c.b16 %v1077, %v1073
  %v1350 = vpack.c.b16 %v1078, %v1074
  %v1351 = vpack.c.b16 %v1083, %v1079
  %v1352 = vpack.c.b16 %v1084, %v1080
  %v1353 = vpack.c.b16 %v1085, %v1081
  %v1354 = vpack.c.b16 %v1086, %v1082
  %v1355 = vpack.c.b16 %v1091, %v1087
  %v1356 = vpack.c.b16 %v1092, %v1088
  %v1357 = vpack.c.b16 %v1093, %v1089
  %v1358 = vpack.c.b16 %v1094, %v1090
  %v1359 = vpack.c.b16 %v1099, %v1095
  %v1360 = vpack.c.b16 %v1100, %v1096
  %v1361 = vpack.c.b16 %v1101, %v1097
  %v1362 = vpack.c.b16 %v1102, %v1098
  %v1363 = vpack.c.b16 %v1107, %v1103
  %v1364 = vpack.c.b16 %v1108, %v1104
  %v1365 = vpack.c.b16 %v1109, %v1105
  %v1366 = vpack.c.b16 %v1110, %v1106
  %1623 = vmatprep.subr.bf16.mxu0 %v1112
  %1624 = vmatpush1.bf16.msra.mxu0 %v1111
  %1625 = vmatprep.subr.bf16.mxu0 %v1116
  %1626 = vmatpush1.bf16.msra.mxu0 %v1115
  %1627 = vmatprep.subr.bf16.mxu0 %v1120
  %1628 = vmatpush1.bf16.msra.mxu0 %v1119
  %1629 = vmatprep.subr.bf16.mxu0 %v1124
  %1630 = vmatpush1.bf16.msra.mxu0 %v1123
  %1631 = vmatprep.subr.bf16.mxu0 %v1128
  %1632 = vmatpush1.bf16.msra.mxu0 %v1127
  %1633 = vmatprep.subr.bf16.mxu0 %v1132
  %1634 = vmatpush1.bf16.msra.mxu0 %v1131
  %1635 = vmatprep.subr.bf16.mxu0 %v1136
  %1636 = vmatpush1.bf16.msra.mxu0 %v1135
  %1637 = vmatprep.subr.bf16.mxu0 %v1140
  %1638 = vmatpush1.bf16.msra.mxu0 %v1139
  %1639 = vmatprep.subr.bf16.mxu0 %v1144
  %1640 = vmatpush1.bf16.msra.mxu0 %v1143
  %1641 = vmatprep.subr.bf16.mxu0 %v1148
  %1642 = vmatpush1.bf16.msra.mxu0 %v1147
  %1643 = vmatprep.subr.bf16.mxu0 %v1152
  %1644 = vmatpush1.bf16.msra.mxu0 %v1151
  %1645 = vmatprep.subr.bf16.mxu0 %v1156
  %1646 = vmatpush1.bf16.msra.mxu0 %v1155
  %1647 = vmatprep.subr.bf16.mxu0 %v1160
  %1648 = vmatpush1.bf16.msra.mxu0 %v1159
  %1649 = vmatprep.subr.bf16.mxu0 %v1164
  %1650 = vmatpush1.bf16.msra.mxu0 %v1163
  %1651 = vmatprep.subr.bf16.mxu0 %v1168
  %1652 = vmatpush1.bf16.msra.mxu0 %v1167
  %1653 = vmatprep.subr.bf16.mxu0 %v1172
  %1654 = vmatpush1.bf16.msra.mxu0 %v1171
  %1655 = vmatprep.mubr.bf16.mxu0 %v58
  %1656 = vmatmul.mubr.bf16.gmra.mrb[0].mxu0 %v57
  %v1657 = vpop.f32.mrb[0].mxu0
  %v1658 = vadd.f32 %v326, %v1657
  %v1659 = vpop.f32.mrb[0].mxu0
  %v1660 = vadd.f32 %v330, %v1659
  %v1661 = vpop.f32.mrb[0].mxu0
  %v1662 = vadd.f32 %v326, %v1661
  %v1663 = vpop.f32.mrb[0].mxu0
  %v1664 = vadd.f32 %v330, %v1663
  %1665 = vdwg.mxu0
  %1666 = vmatprep.subr.bf16.mxu0 %v1176
  %1667 = vmatpush1.bf16.msra.mxu0 %v1175
  %1668 = vmatprep.subr.bf16.mxu0 %v1180
  %1669 = vmatpush1.bf16.msra.mxu0 %v1179
  %1670 = vmatprep.subr.bf16.mxu0 %v1184
  %1671 = vmatpush1.bf16.msra.mxu0 %v1183
  %1672 = vmatprep.subr.bf16.mxu0 %v1188
  %1673 = vmatpush1.bf16.msra.mxu0 %v1187
  %1674 = vmatprep.subr.bf16.mxu0 %v1192
  %1675 = vmatpush1.bf16.msra.mxu0 %v1191
  %1676 = vmatprep.subr.bf16.mxu0 %v1196
  %1677 = vmatpush1.bf16.msra.mxu0 %v1195
  %1678 = vmatprep.subr.bf16.mxu0 %v1200
  %1679 = vmatpush1.bf16.msra.mxu0 %v1199
  %1680 = vmatprep.subr.bf16.mxu0 %v1204
  %1681 = vmatpush1.bf16.msra.mxu0 %v1203
  %1682 = vmatprep.subr.bf16.mxu0 %v1208
  %1683 = vmatpush1.bf16.msra.mxu0 %v1207
  %1684 = vmatprep.subr.bf16.mxu0 %v1212
  %1685 = vmatpush1.bf16.msra.mxu0 %v1211
  %1686 = vmatprep.subr.bf16.mxu0 %v1216
  %1687 = vmatpush1.bf16.msra.mxu0 %v1215
  %1688 = vmatprep.subr.bf16.mxu0 %v1220
  %1689 = vmatpush1.bf16.msra.mxu0 %v1219
  %1690 = vmatprep.subr.bf16.mxu0 %v1224
  %1691 = vmatpush1.bf16.msra.mxu0 %v1223
  %1692 = vmatprep.subr.bf16.mxu0 %v1228
  %1693 = vmatpush1.bf16.msra.mxu0 %v1227
  %1694 = vmatprep.subr.bf16.mxu0 %v1232
  %1695 = vmatpush1.bf16.msra.mxu0 %v1231
  %1696 = vmatprep.subr.bf16.mxu0 %v1236
  %1697 = vmatpush1.bf16.msra.mxu0 %v1235
  %1698 = vmatprep.mubr.bf16.mxu0 %v60
  %1699 = vmatmul.mubr.bf16.gmra.mrb[0].mxu0 %v59
  %v1700 = vpop.f32.mrb[0].mxu0
  %v1701 = vadd.f32 %v1658, %v1700
  %v1702 = vpop.f32.mrb[0].mxu0
  %v1703 = vadd.f32 %v1660, %v1702
  %v1704 = vpop.f32.mrb[0].mxu0
  %v1705 = vadd.f32 %v1662, %v1704
  %v1706 = vpop.f32.mrb[0].mxu0
  %v1707 = vadd.f32 %v1664, %v1706
  %1708 = vdwg.mxu0
  %1709 = vmatprep.subr.bf16.mxu0 %v1240
  %1710 = vmatpush1.bf16.msra.mxu0 %v1239
  %1711 = vmatprep.subr.bf16.mxu0 %v1244
  %1712 = vmatpush1.bf16.msra.mxu0 %v1243
  %1713 = vmatprep.subr.bf16.mxu0 %v1248
  %1714 = vmatpush1.bf16.msra.mxu0 %v1247
  %1715 = vmatprep.subr.bf16.mxu0 %v1252
  %1716 = vmatpush1.bf16.msra.mxu0 %v1251
  %1717 = vmatprep.subr.bf16.mxu0 %v1256
  %1718 = vmatpush1.bf16.msra.mxu0 %v1255
  %1719 = vmatprep.subr.bf16.mxu0 %v1260
  %1720 = vmatpush1.bf16.msra.mxu0 %v1259
  %1721 = vmatprep.subr.bf16.mxu0 %v1264
  %1722 = vmatpush1.bf16.msra.mxu0 %v1263
  %1723 = vmatprep.subr.bf16.mxu0 %v1268
  %1724 = vmatpush1.bf16.msra.mxu0 %v1267
  %1725 = vmatprep.subr.bf16.mxu0 %v1272
  %1726 = vmatpush1.bf16.msra.mxu0 %v1271
  %1727 = vmatprep.subr.bf16.mxu0 %v1276
  %1728 = vmatpush1.bf16.msra.mxu0 %v1275
  %1729 = vmatprep.subr.bf16.mxu0 %v1280
  %1730 = vmatpush1.bf16.msra.mxu0 %v1279
  %1731 = vmatprep.subr.bf16.mxu0 %v1284
  %1732 = vmatpush1.bf16.msra.mxu0 %v1283
  %1733 = vmatprep.subr.bf16.mxu0 %v1288
  %1734 = vmatpush1.bf16.msra.mxu0 %v1287
  %1735 = vmatprep.subr.bf16.mxu0 %v1292
  %1736 = vmatpush1.bf16.msra.mxu0 %v1291
  %1737 = vmatprep.subr.bf16.mxu0 %v1296
  %1738 = vmatpush1.bf16.msra.mxu0 %v1295
  %1739 = vmatprep.subr.bf16.mxu0 %v1300
  %1740 = vmatpush1.bf16.msra.mxu0 %v1299
  %1741 = vmatprep.mubr.bf16.mxu0 %v62
  %1742 = vmatmul.mubr.bf16.gmra.mrb[0].mxu0 %v61
  %v1743 = vpop.f32.mrb[0].mxu0
  %v1744 = vadd.f32 %v1701, %v1743
  %v1745 = vpop.f32.mrb[0].mxu0
  %v1746 = vadd.f32 %v1703, %v1745
  %v1747 = vpop.f32.mrb[0].mxu0
  %v1748 = vadd.f32 %v1705, %v1747
  %v1749 = vpop.f32.mrb[0].mxu0
  %v1750 = vadd.f32 %v1707, %v1749
  %1751 = vdwg.mxu0
  %1752 = vmatprep.subr.bf16.mxu0 %v1304
  %1753 = vmatpush1.bf16.msra.mxu0 %v1303
  %1754 = vmatprep.subr.bf16.mxu0 %v1308
  %1755 = vmatpush1.bf16.msra.mxu0 %v1307
  %1756 = vmatprep.subr.bf16.mxu0 %v1312
  %1757 = vmatpush1.bf16.msra.mxu0 %v1311
  %1758 = vmatprep.subr.bf16.mxu0 %v1316
  %1759 = vmatpush1.bf16.msra.mxu0 %v1315
  %1760 = vmatprep.subr.bf16.mxu0 %v1320
  %1761 = vmatpush1.bf16.msra.mxu0 %v1319
  %1762 = vmatprep.subr.bf16.mxu0 %v1324
  %1763 = vmatpush1.bf16.msra.mxu0 %v1323
  %1764 = vmatprep.subr.bf16.mxu0 %v1328
  %1765 = vmatpush1.bf16.msra.mxu0 %v1327
  %1766 = vmatprep.subr.bf16.mxu0 %v1332
  %1767 = vmatpush1.bf16.msra.mxu0 %v1331
  %1768 = vmatprep.subr.bf16.mxu0 %v1336
  %1769 = vmatpush1.bf16.msra.mxu0 %v1335
  %1770 = vmatprep.subr.bf16.mxu0 %v1340
  %1771 = vmatpush1.bf16.msra.mxu0 %v1339
  %1772 = vmatprep.subr.bf16.mxu0 %v1344
  %1773 = vmatpush1.bf16.msra.mxu0 %v1343
  %1774 = vmatprep.subr.bf16.mxu0 %v1348
  %1775 = vmatpush1.bf16.msra.mxu0 %v1347
  %1776 = vmatprep.subr.bf16.mxu0 %v1352
  %1777 = vmatpush1.bf16.msra.mxu0 %v1351
  %1778 = vmatprep.subr.bf16.mxu0 %v1356
  %1779 = vmatpush1.bf16.msra.mxu0 %v1355
  %1780 = vmatprep.subr.bf16.mxu0 %v1360
  %1781 = vmatpush1.bf16.msra.mxu0 %v1359
  %1782 = vmatprep.subr.bf16.mxu0 %v1364
  %1783 = vmatpush1.bf16.msra.mxu0 %v1363
  %1784 = vmatprep.mubr.bf16.mxu0 %v64
  %1785 = vmatmul.mubr.bf16.gmra.mrb[0].mxu0 %v63
  %v1786 = vpop.f32.mrb[0].mxu0
  %v1787 = vadd.f32 %v1744, %v1786
  %v1788 = vpop.f32.mrb[0].mxu0
  %v1789 = vadd.f32 %v1746, %v1788
  %v1790 = vpop.f32.mrb[0].mxu0
  %v1791 = vadd.f32 %v1748, %v1790
  %v1792 = vpop.f32.mrb[0].mxu0
  %v1793 = vadd.f32 %v1750, %v1792
  %1794 = vdwg.mxu0
  %1795 = vmatprep.subr.bf16.mxu0 %v1114
  %1796 = vmatpush1.bf16.msra.mxu0 %v1113
  %1797 = vmatprep.subr.bf16.mxu0 %v1118
  %1798 = vmatpush1.bf16.msra.mxu0 %v1117
  %1799 = vmatprep.subr.bf16.mxu0 %v1122
  %1800 = vmatpush1.bf16.msra.mxu0 %v1121
  %1801 = vmatprep.subr.bf16.mxu0 %v1126
  %1802 = vmatpush1.bf16.msra.mxu0 %v1125
  %1803 = vmatprep.subr.bf16.mxu0 %v1130
  %1804 = vmatpush1.bf16.msra.mxu0 %v1129
  %1805 = vmatprep.subr.bf16.mxu0 %v1134
  %1806 = vmatpush1.bf16.msra.mxu0 %v1133
  %1807 = vmatprep.subr.bf16.mxu0 %v1138
  %1808 = vmatpush1.bf16.msra.mxu0 %v1137
  %1809 = vmatprep.subr.bf16.mxu0 %v1142
  %1810 = vmatpush1.bf16.msra.mxu0 %v1141
  %1811 = vmatprep.subr.bf16.mxu0 %v1146
  %1812 = vmatpush1.bf16.msra.mxu0 %v1145
  %1813 = vmatprep.subr.bf16.mxu0 %v1150
  %1814 = vmatpush1.bf16.msra.mxu0 %v1149
  %1815 = vmatprep.subr.bf16.mxu0 %v1154
  %1816 = vmatpush1.bf16.msra.mxu0 %v1153
  %1817 = vmatprep.subr.bf16.mxu0 %v1158
  %1818 = vmatpush1.bf16.msra.mxu0 %v1157
  %1819 = vmatprep.subr.bf16.mxu0 %v1162
  %1820 = vmatpush1.bf16.msra.mxu0 %v1161
  %1821 = vmatprep.subr.bf16.mxu0 %v1166
  %1822 = vmatpush1.bf16.msra.mxu0 %v1165
  %1823 = vmatprep.subr.bf16.mxu0 %v1170
  %1824 = vmatpush1.bf16.msra.mxu0 %v1169
  %1825 = vmatprep.subr.bf16.mxu0 %v1174
  %1826 = vmatpush1.bf16.msra.mxu0 %v1173
  %1827 = vmatprep.mubr.bf16.mxu0 %v58
  %1828 = vmatmul.mubr.bf16.gmra.mrb[0].mxu0 %v57
  %v1829 = vpop.f32.mrb[0].mxu0
  %v1830 = vadd.f32 %v334, %v1829
  %v1831 = vpop.f32.mrb[0].mxu0
  %v1832 = vadd.f32 %v338, %v1831
  %v1833 = vpop.f32.mrb[0].mxu0
  %v1834 = vadd.f32 %v334, %v1833
  %v1835 = vpop.f32.mrb[0].mxu0
  %v1836 = vadd.f32 %v338, %v1835
  %1837 = vdwg.mxu0
  %1838 = vmatprep.subr.bf16.mxu0 %v1178
  %1839 = vmatpush1.bf16.msra.mxu0 %v1177
  %1840 = vmatprep.subr.bf16.mxu0 %v1182
  %1841 = vmatpush1.bf16.msra.mxu0 %v1181
  %1842 = vmatprep.subr.bf16.mxu0 %v1186
  %1843 = vmatpush1.bf16.msra.mxu0 %v1185
  %1844 = vmatprep.subr.bf16.mxu0 %v1190
  %1845 = vmatpush1.bf16.msra.mxu0 %v1189
  %1846 = vmatprep.subr.bf16.mxu0 %v1194
  %1847 = vmatpush1.bf16.msra.mxu0 %v1193
  %1848 = vmatprep.subr.bf16.mxu0 %v1198
  %1849 = vmatpush1.bf16.msra.mxu0 %v1197
  %1850 = vmatprep.subr.bf16.mxu0 %v1202
  %1851 = vmatpush1.bf16.msra.mxu0 %v1201
  %1852 = vmatprep.subr.bf16.mxu0 %v1206
  %1853 = vmatpush1.bf16.msra.mxu0 %v1205
  %1854 = vmatprep.subr.bf16.mxu0 %v1210
  %1855 = vmatpush1.bf16.msra.mxu0 %v1209
  %1856 = vmatprep.subr.bf16.mxu0 %v1214
  %1857 = vmatpush1.bf16.msra.mxu0 %v1213
  %1858 = vmatprep.subr.bf16.mxu0 %v1218
  %1859 = vmatpush1.bf16.msra.mxu0 %v1217
  %1860 = vmatprep.subr.bf16.mxu0 %v1222
  %1861 = vmatpush1.bf16.msra.mxu0 %v1221
  %1862 = vmatprep.subr.bf16.mxu0 %v1226
  %1863 = vmatpush1.bf16.msra.mxu0 %v1225
  %1864 = vmatprep.subr.bf16.mxu0 %v1230
  %1865 = vmatpush1.bf16.msra.mxu0 %v1229
  %1866 = vmatprep.subr.bf16.mxu0 %v1234
  %1867 = vmatpush1.bf16.msra.mxu0 %v1233
  %1868 = vmatprep.subr.bf16.mxu0 %v1238
  %1869 = vmatpush1.bf16.msra.mxu0 %v1237
  %1870 = vmatprep.mubr.bf16.mxu0 %v60
  %1871 = vmatmul.mubr.bf16.gmra.mrb[0].mxu0 %v59
  %v1872 = vpop.f32.mrb[0].mxu0
  %v1873 = vadd.f32 %v1830, %v1872
  %v1874 = vpop.f32.mrb[0].mxu0
  %v1875 = vadd.f32 %v1832, %v1874
  %v1876 = vpop.f32.mrb[0].mxu0
  %v1877 = vadd.f32 %v1834, %v1876
  %v1878 = vpop.f32.mrb[0].mxu0
  %v1879 = vadd.f32 %v1836, %v1878
  %1880 = vdwg.mxu0
  %1881 = vmatprep.subr.bf16.mxu0 %v1242
  %1882 = vmatpush1.bf16.msra.mxu0 %v1241
  %1883 = vmatprep.subr.bf16.mxu0 %v1246
  %1884 = vmatpush1.bf16.msra.mxu0 %v1245
  %1885 = vmatprep.subr.bf16.mxu0 %v1250
  %1886 = vmatpush1.bf16.msra.mxu0 %v1249
  %1887 = vmatprep.subr.bf16.mxu0 %v1254
  %1888 = vmatpush1.bf16.msra.mxu0 %v1253
  %1889 = vmatprep.subr.bf16.mxu0 %v1258
  %1890 = vmatpush1.bf16.msra.mxu0 %v1257
  %1891 = vmatprep.subr.bf16.mxu0 %v1262
  %1892 = vmatpush1.bf16.msra.mxu0 %v1261
  %1893 = vmatprep.subr.bf16.mxu0 %v1266
  %1894 = vmatpush1.bf16.msra.mxu0 %v1265
  %1895 = vmatprep.subr.bf16.mxu0 %v1270
  %1896 = vmatpush1.bf16.msra.mxu0 %v1269
  %1897 = vmatprep.subr.bf16.mxu0 %v1274
  %1898 = vmatpush1.bf16.msra.mxu0 %v1273
  %1899 = vmatprep.subr.bf16.mxu0 %v1278
  %1900 = vmatpush1.bf16.msra.mxu0 %v1277
  %1901 = vmatprep.subr.bf16.mxu0 %v1282
  %1902 = vmatpush1.bf16.msra.mxu0 %v1281
  %1903 = vmatprep.subr.bf16.mxu0 %v1286
  %1904 = vmatpush1.bf16.msra.mxu0 %v1285
  %1905 = vmatprep.subr.bf16.mxu0 %v1290
  %1906 = vmatpush1.bf16.msra.mxu0 %v1289
  %1907 = vmatprep.subr.bf16.mxu0 %v1294
  %1908 = vmatpush1.bf16.msra.mxu0 %v1293
  %1909 = vmatprep.subr.bf16.mxu0 %v1298
  %1910 = vmatpush1.bf16.msra.mxu0 %v1297
  %1911 = vmatprep.subr.bf16.mxu0 %v1302
  %1912 = vmatpush1.bf16.msra.mxu0 %v1301
  %1913 = vmatprep.mubr.bf16.mxu0 %v62
  %1914 = vmatmul.mubr.bf16.gmra.mrb[0].mxu0 %v61
  %v1915 = vpop.f32.mrb[0].mxu0
  %v1916 = vadd.f32 %v1873, %v1915
  %v1917 = vpop.f32.mrb[0].mxu0
  %v1918 = vadd.f32 %v1875, %v1917
  %v1919 = vpop.f32.mrb[0].mxu0
  %v1920 = vadd.f32 %v1877, %v1919
  %v1921 = vpop.f32.mrb[0].mxu0
  %v1922 = vadd.f32 %v1879, %v1921
  %1923 = vdwg.mxu0
  %1924 = vmatprep.subr.bf16.mxu0 %v1306
  %1925 = vmatpush1.bf16.msra.mxu0 %v1305
  %1926 = vmatprep.subr.bf16.mxu0 %v1310
  %1927 = vmatpush1.bf16.msra.mxu0 %v1309
  %1928 = vmatprep.subr.bf16.mxu0 %v1314
  %1929 = vmatpush1.bf16.msra.mxu0 %v1313
  %1930 = vmatprep.subr.bf16.mxu0 %v1318
  %1931 = vmatpush1.bf16.msra.mxu0 %v1317
  %1932 = vmatprep.subr.bf16.mxu0 %v1322
  %1933 = vmatpush1.bf16.msra.mxu0 %v1321
  %1934 = vmatprep.subr.bf16.mxu0 %v1326
  %1935 = vmatpush1.bf16.msra.mxu0 %v1325
  %1936 = vmatprep.subr.bf16.mxu0 %v1330
  %1937 = vmatpush1.bf16.msra.mxu0 %v1329
  %1938 = vmatprep.subr.bf16.mxu0 %v1334
  %1939 = vmatpush1.bf16.msra.mxu0 %v1333
  %1940 = vmatprep.subr.bf16.mxu0 %v1338
  %1941 = vmatpush1.bf16.msra.mxu0 %v1337
  %1942 = vmatprep.subr.bf16.mxu0 %v1342
  %1943 = vmatpush1.bf16.msra.mxu0 %v1341
  %1944 = vmatprep.subr.bf16.mxu0 %v1346
  %1945 = vmatpush1.bf16.msra.mxu0 %v1345
  %1946 = vmatprep.subr.bf16.mxu0 %v1350
  %1947 = vmatpush1.bf16.msra.mxu0 %v1349
  %1948 = vmatprep.subr.bf16.mxu0 %v1354
  %1949 = vmatpush1.bf16.msra.mxu0 %v1353
  %1950 = vmatprep.subr.bf16.mxu0 %v1358
  %1951 = vmatpush1.bf16.msra.mxu0 %v1357
  %1952 = vmatprep.subr.bf16.mxu0 %v1362
  %1953 = vmatpush1.bf16.msra.mxu0 %v1361
  %1954 = vmatprep.subr.bf16.mxu0 %v1366
  %1955 = vmatpush1.bf16.msra.mxu0 %v1365
  %1956 = vmatprep.mubr.bf16.mxu0 %v64
  %1957 = vmatmul.mubr.bf16.gmra.mrb[0].mxu0 %v63
  %v1958 = vpop.f32.mrb[0].mxu0
  %v1959 = vadd.f32 %v1916, %v1958
  %v1960 = vpop.f32.mrb[0].mxu0
  %v1961 = vadd.f32 %v1918, %v1960
  %v1962 = vpop.f32.mrb[0].mxu0
  %v1963 = vadd.f32 %v1920, %v1962
  %v1964 = vpop.f32.mrb[0].mxu0
  %v1965 = vadd.f32 %v1922, %v1964
  %1966 = vdwg.mxu0
  %1967 = vst [vmem:[%s12] sm:$0xff] %v1787
  %1968 = vst [vmem:[%s12 + $0x8] sm:$0xff] %v1789
  %1969 = vst [vmem:[%s12 + $0x10] sm:$0xff] %v1959
  %1970 = vst [vmem:[%s12 + $0x18] sm:$0xff] %v1961
  %1971 = vst [vmem:[%s12 + $0x20] sm:$0xff] %v1791
  %1972 = vst [vmem:[%s12 + $0x28] sm:$0xff] %v1793
  %1973 = vst [vmem:[%s12 + $0x30] sm:$0xff] %v1963
  %1974 = vst [vmem:[%s12 + $0x38] sm:$0xff] %v1965
  %v1975 = vpack.c.bf16 %v1791, %v1787
  %v1976 = vpack.c.bf16 %v1793, %v1789
  %v1977 = vpack.c.bf16 %v1963, %v1959
  %v1978 = vpack.c.bf16 %v1965, %v1961
  %v1979 = vld [vmem:[%s3] sm:$0xf]
  %v1980 = vld [vmem:[%s3 + $0x4] sm:$0xf]
  %v1981 = vld [vmem:[%s3 + $0x8] sm:$0xf]
  %v1982 = vld [vmem:[%s3 + $0xc] sm:$0xf]
  %v1983 = vld [vmem:[%s3 + $0x10] sm:$0xf]
  %v1984 = vld [vmem:[%s3 + $0x14] sm:$0xf]
  %v1985 = vld [vmem:[%s3 + $0x18] sm:$0xf]
  %v1986 = vld [vmem:[%s3 + $0x1c] sm:$0xf]
  %v1987 = vld [vmem:[%s3 + $0x20] sm:$0xf]
  %v1988 = vld [vmem:[%s3 + $0x24] sm:$0xf]
  %v1989 = vld [vmem:[%s3 + $0x28] sm:$0xf]
  %v1990 = vld [vmem:[%s3 + $0x2c] sm:$0xf]
  %v1991 = vld [vmem:[%s3 + $0x30] sm:$0xf]
  %v1992 = vld [vmem:[%s3 + $0x34] sm:$0xf]
  %v1993 = vld [vmem:[%s3 + $0x38] sm:$0xf]
  %v1994 = vld [vmem:[%s3 + $0x3c] sm:$0xf]
  %v1995 = vld [vmem:[%s3 + $0x40] sm:$0xf]
  %v1996 = vld [vmem:[%s3 + $0x44] sm:$0xf]
  %v1997 = vld [vmem:[%s3 + $0x48] sm:$0xf]
  %v1998 = vld [vmem:[%s3 + $0x4c] sm:$0xf]
  %v1999 = vld [vmem:[%s3 + $0x50] sm:$0xf]
  %v2000 = vld [vmem:[%s3 + $0x54] sm:$0xf]
  %v2001 = vld [vmem:[%s3 + $0x58] sm:$0xf]
  %v2002 = vld [vmem:[%s3 + $0x5c] sm:$0xf]
  %v2003 = vld [vmem:[%s3 + $0x60] sm:$0xf]
  %v2004 = vld [vmem:[%s3 + $0x64] sm:$0xf]
  %v2005 = vld [vmem:[%s3 + $0x68] sm:$0xf]
  %v2006 = vld [vmem:[%s3 + $0x6c] sm:$0xf]
  %v2007 = vld [vmem:[%s3 + $0x70] sm:$0xf]
  %v2008 = vld [vmem:[%s3 + $0x74] sm:$0xf]
  %v2009 = vld [vmem:[%s3 + $0x78] sm:$0xf]
  %v2010 = vld [vmem:[%s3 + $0x7c] sm:$0xf]
  %v2011 = vld [vmem:[%s3 + $0x80] sm:$0xf]
  %v2012 = vld [vmem:[%s3 + $0x84] sm:$0xf]
  %v2013 = vld [vmem:[%s3 + $0x88] sm:$0xf]
  %v2014 = vld [vmem:[%s3 + $0x8c] sm:$0xf]
  %v2015 = vld [vmem:[%s3 + $0x90] sm:$0xf]
  %v2016 = vld [vmem:[%s3 + $0x94] sm:$0xf]
  %v2017 = vld [vmem:[%s3 + $0x98] sm:$0xf]
  %v2018 = vld [vmem:[%s3 + $0x9c] sm:$0xf]
  %v2019 = vld [vmem:[%s3 + $0xa0] sm:$0xf]
  %v2020 = vld [vmem:[%s3 + $0xa4] sm:$0xf]
  %v2021 = vld [vmem:[%s3 + $0xa8] sm:$0xf]
  %v2022 = vld [vmem:[%s3 + $0xac] sm:$0xf]
  %v2023 = vld [vmem:[%s3 + $0xb0] sm:$0xf]
  %v2024 = vld [vmem:[%s3 + $0xb4] sm:$0xf]
  %v2025 = vld [vmem:[%s3 + $0xb8] sm:$0xf]
  %v2026 = vld [vmem:[%s3 + $0xbc] sm:$0xf]
  %v2027 = vld [vmem:[%s3 + $0xc0] sm:$0xf]
  %v2028 = vld [vmem:[%s3 + $0xc4] sm:$0xf]
  %v2029 = vld [vmem:[%s3 + $0xc8] sm:$0xf]
  %v2030 = vld [vmem:[%s3 + $0xcc] sm:$0xf]
  %v2031 = vld [vmem:[%s3 + $0xd0] sm:$0xf]
  %v2032 = vld [vmem:[%s3 + $0xd4] sm:$0xf]
  %v2033 = vld [vmem:[%s3 + $0xd8] sm:$0xf]
  %v2034 = vld [vmem:[%s3 + $0xdc] sm:$0xf]
  %v2035 = vld [vmem:[%s3 + $0xe0] sm:$0xf]
  %v2036 = vld [vmem:[%s3 + $0xe4] sm:$0xf]
  %v2037 = vld [vmem:[%s3 + $0xe8] sm:$0xf]
  %v2038 = vld [vmem:[%s3 + $0xec] sm:$0xf]
  %v2039 = vld [vmem:[%s3 + $0xf0] sm:$0xf]
  %v2040 = vld [vmem:[%s3 + $0xf4] sm:$0xf]
  %v2041 = vld [vmem:[%s3 + $0xf8] sm:$0xf]
  %v2042 = vld [vmem:[%s3 + $0xfc] sm:$0xf]
  %v2043 = vld [vmem:[%s4] sm:$0x1]
  %v2045 = vlaneseq
  %v2046 = vshrl.u32 %v2045, 7
  %v2047 = vsub.s32 0, %v2046
  %v2048 = vrot.slane %v2043, %v2047
  %v2114 = vunpack.c.l.b16 %v1979
  %v2115 = vunpack.c.l.b16 %v1980
  %v2116 = vunpack.c.l.b16 %v1981
  %v2117 = vunpack.c.l.b16 %v1982
  %v2118 = vunpack.c.l.b16 %v1983
  %v2119 = vunpack.c.l.b16 %v1984
  %v2120 = vunpack.c.l.b16 %v1985
  %v2121 = vunpack.c.l.b16 %v1986
  %v2122 = vunpack.c.l.b16 %v1987
  %v2123 = vunpack.c.l.b16 %v1988
  %v2124 = vunpack.c.l.b16 %v1989
  %v2125 = vunpack.c.l.b16 %v1990
  %v2126 = vunpack.c.l.b16 %v1991
  %v2127 = vunpack.c.l.b16 %v1992
  %v2128 = vunpack.c.l.b16 %v1993
  %v2129 = vunpack.c.l.b16 %v1994
  %v2130 = vunpack.c.l.b16 %v1995
  %v2131 = vunpack.c.l.b16 %v1996
  %v2132 = vunpack.c.l.b16 %v1997
  %v2133 = vunpack.c.l.b16 %v1998
  %v2134 = vunpack.c.l.b16 %v1999
  %v2135 = vunpack.c.l.b16 %v2000
  %v2136 = vunpack.c.l.b16 %v2001
  %v2137 = vunpack.c.l.b16 %v2002
  %v2138 = vunpack.c.l.b16 %v2003
  %v2139 = vunpack.c.l.b16 %v2004
  %v2140 = vunpack.c.l.b16 %v2005
  %v2141 = vunpack.c.l.b16 %v2006
  %v2142 = vunpack.c.l.b16 %v2007
  %v2143 = vunpack.c.l.b16 %v2008
  %v2144 = vunpack.c.l.b16 %v2009
  %v2145 = vunpack.c.l.b16 %v2010
  %v2146 = vunpack.c.l.b16 %v2011
  %v2147 = vunpack.c.l.b16 %v2012
  %v2148 = vunpack.c.l.b16 %v2013
  %v2149 = vunpack.c.l.b16 %v2014
  %v2150 = vunpack.c.l.b16 %v2015
  %v2151 = vunpack.c.l.b16 %v2016
  %v2152 = vunpack.c.l.b16 %v2017
  %v2153 = vunpack.c.l.b16 %v2018
  %v2154 = vunpack.c.l.b16 %v2019
  %v2155 = vunpack.c.l.b16 %v2020
  %v2156 = vunpack.c.l.b16 %v2021
  %v2157 = vunpack.c.l.b16 %v2022
  %v2158 = vunpack.c.l.b16 %v2023
  %v2159 = vunpack.c.l.b16 %v2024
  %v2160 = vunpack.c.l.b16 %v2025
  %v2161 = vunpack.c.l.b16 %v2026
  %v2162 = vunpack.c.l.b16 %v2027
  %v2163 = vunpack.c.l.b16 %v2028
  %v2164 = vunpack.c.l.b16 %v2029
  %v2165 = vunpack.c.l.b16 %v2030
  %v2166 = vunpack.c.l.b16 %v2031
  %v2167 = vunpack.c.l.b16 %v2032
  %v2168 = vunpack.c.l.b16 %v2033
  %v2169 = vunpack.c.l.b16 %v2034
  %v2170 = vunpack.c.l.b16 %v2035
  %v2171 = vunpack.c.l.b16 %v2036
  %v2172 = vunpack.c.l.b16 %v2037
  %v2173 = vunpack.c.l.b16 %v2038
  %v2174 = vunpack.c.l.b16 %v2039
  %v2175 = vunpack.c.l.b16 %v2040
  %v2176 = vunpack.c.l.b16 %v2041
  %v2177 = vunpack.c.l.b16 %v2042
  %v2178 = vpack.c.b16 %v2115, %v2114
  %v2179 = vpack.c.b16 %v2117, %v2116
  %v2180 = vpack.c.b16 %v2119, %v2118
  %v2181 = vpack.c.b16 %v2121, %v2120
  %v2182 = vpack.c.b16 %v2123, %v2122
  %v2183 = vpack.c.b16 %v2125, %v2124
  %v2184 = vpack.c.b16 %v2127, %v2126
  %v2185 = vpack.c.b16 %v2129, %v2128
  %v2186 = vpack.c.b16 %v2131, %v2130
  %v2187 = vpack.c.b16 %v2133, %v2132
  %v2188 = vpack.c.b16 %v2135, %v2134
  %v2189 = vpack.c.b16 %v2137, %v2136
  %v2190 = vpack.c.b16 %v2139, %v2138
  %v2191 = vpack.c.b16 %v2141, %v2140
  %v2192 = vpack.c.b16 %v2143, %v2142
  %v2193 = vpack.c.b16 %v2145, %v2144
  %v2194 = vpack.c.b16 %v2147, %v2146
  %v2195 = vpack.c.b16 %v2149, %v2148
  %v2196 = vpack.c.b16 %v2151, %v2150
  %v2197 = vpack.c.b16 %v2153, %v2152
  %v2198 = vpack.c.b16 %v2155, %v2154
  %v2199 = vpack.c.b16 %v2157, %v2156
  %v2200 = vpack.c.b16 %v2159, %v2158
  %v2201 = vpack.c.b16 %v2161, %v2160
  %v2202 = vpack.c.b16 %v2163, %v2162
  %v2203 = vpack.c.b16 %v2165, %v2164
  %v2204 = vpack.c.b16 %v2167, %v2166
  %v2205 = vpack.c.b16 %v2169, %v2168
  %v2206 = vpack.c.b16 %v2171, %v2170
  %v2207 = vpack.c.b16 %v2173, %v2172
  %v2208 = vpack.c.b16 %v2175, %v2174
  %v2209 = vpack.c.b16 %v2177, %v2176
  %2242 = vmatprep.subr.bf16.mxu0 0
  %2243 = vmatpush1.bf16.msra.mxu0 %v2178
  %2244 = vmatprep.subr.bf16.mxu0 0
  %2245 = vmatpush1.bf16.msra.mxu0 %v2179
  %2246 = vmatprep.subr.bf16.mxu0 0
  %2247 = vmatpush1.bf16.msra.mxu0 %v2180
  %2248 = vmatprep.subr.bf16.mxu0 0
  %2249 = vmatpush1.bf16.msra.mxu0 %v2181
  %2250 = vmatprep.subr.bf16.mxu0 0
  %2251 = vmatpush1.bf16.msra.mxu0 %v2182
  %2252 = vmatprep.subr.bf16.mxu0 0
  %2253 = vmatpush1.bf16.msra.mxu0 %v2183
  %2254 = vmatprep.subr.bf16.mxu0 0
  %2255 = vmatpush1.bf16.msra.mxu0 %v2184
  %2256 = vmatprep.subr.bf16.mxu0 0
  %2257 = vmatpush1.bf16.msra.mxu0 %v2185
  %2258 = vmatprep.subr.bf16.mxu0 0
  %2259 = vmatpush1.bf16.msra.mxu0 %v2186
  %2260 = vmatprep.subr.bf16.mxu0 0
  %2261 = vmatpush1.bf16.msra.mxu0 %v2187
  %2262 = vmatprep.subr.bf16.mxu0 0
  %2263 = vmatpush1.bf16.msra.mxu0 %v2188
  %2264 = vmatprep.subr.bf16.mxu0 0
  %2265 = vmatpush1.bf16.msra.mxu0 %v2189
  %2266 = vmatprep.subr.bf16.mxu0 0
  %2267 = vmatpush1.bf16.msra.mxu0 %v2190
  %2268 = vmatprep.subr.bf16.mxu0 0
  %2269 = vmatpush1.bf16.msra.mxu0 %v2191
  %2270 = vmatprep.subr.bf16.mxu0 0
  %2271 = vmatpush1.bf16.msra.mxu0 %v2192
  %2272 = vmatprep.subr.bf16.mxu0 0
  %2273 = vmatpush1.bf16.msra.mxu0 %v2193
  %2274 = vmatprep.mubr.bf16.mxu0 %v1976
  %2275 = vmatmul.mubr.bf16.gmra.mrb[0].mxu0 %v1975
  %v2276 = vpop.f32.mrb[0].mxu0
  %v2277 = vadd.f32 %v2048, %v2276
  %v2278 = vpop.f32.mrb[0].mxu0
  %v2279 = vpop.f32.mrb[0].mxu0
  %v2280 = vadd.f32 %v2048, %v2279
  %v2281 = vpop.f32.mrb[0].mxu0
  %2282 = vdwg.mxu0
  %2283 = vmatprep.subr.bf16.mxu0 0
  %2284 = vmatpush1.bf16.msra.mxu0 %v2194
  %2285 = vmatprep.subr.bf16.mxu0 0
  %2286 = vmatpush1.bf16.msra.mxu0 %v2195
  %2287 = vmatprep.subr.bf16.mxu0 0
  %2288 = vmatpush1.bf16.msra.mxu0 %v2196
  %2289 = vmatprep.subr.bf16.mxu0 0
  %2290 = vmatpush1.bf16.msra.mxu0 %v2197
  %2291 = vmatprep.subr.bf16.mxu0 0
  %2292 = vmatpush1.bf16.msra.mxu0 %v2198
  %2293 = vmatprep.subr.bf16.mxu0 0
  %2294 = vmatpush1.bf16.msra.mxu0 %v2199
  %2295 = vmatprep.subr.bf16.mxu0 0
  %2296 = vmatpush1.bf16.msra.mxu0 %v2200
  %2297 = vmatprep.subr.bf16.mxu0 0
  %2298 = vmatpush1.bf16.msra.mxu0 %v2201
  %2299 = vmatprep.subr.bf16.mxu0 0
  %2300 = vmatpush1.bf16.msra.mxu0 %v2202
  %2301 = vmatprep.subr.bf16.mxu0 0
  %2302 = vmatpush1.bf16.msra.mxu0 %v2203
  %2303 = vmatprep.subr.bf16.mxu0 0
  %2304 = vmatpush1.bf16.msra.mxu0 %v2204
  %2305 = vmatprep.subr.bf16.mxu0 0
  %2306 = vmatpush1.bf16.msra.mxu0 %v2205
  %2307 = vmatprep.subr.bf16.mxu0 0
  %2308 = vmatpush1.bf16.msra.mxu0 %v2206
  %2309 = vmatprep.subr.bf16.mxu0 0
  %2310 = vmatpush1.bf16.msra.mxu0 %v2207
  %2311 = vmatprep.subr.bf16.mxu0 0
  %2312 = vmatpush1.bf16.msra.mxu0 %v2208
  %2313 = vmatprep.subr.bf16.mxu0 0
  %2314 = vmatpush1.bf16.msra.mxu0 %v2209
  %2315 = vmatprep.mubr.bf16.mxu0 %v1978
  %2316 = vmatmul.mubr.bf16.gmra.mrb[0].mxu0 %v1977
  %v2317 = vpop.f32.mrb[0].mxu0
  %v2318 = vadd.f32 %v2277, %v2317
  %v2319 = vpop.f32.mrb[0].mxu0
  %v2320 = vpop.f32.mrb[0].mxu0
  %v2321 = vadd.f32 %v2280, %v2320
  %v2322 = vpop.f32.mrb[0].mxu0
  %2323 = vdwg.mxu0
  %v2324 = vmax.f32 %v2318, 0.0
  %v2325 = vmax.f32 %v2321, 0.0
  %v2326 = vpack.c.bf16 %v2325, %v2324
  %v2327 = vld [vmem:[%s5] sm:$0xf]
  %v2328 = vld [vmem:[%s5 + $0x4] sm:$0xf]
  %v2329 = vld [vmem:[%s5 + $0x8] sm:$0xf]
  %v2330 = vld [vmem:[%s5 + $0xc] sm:$0xf]
  %v2331 = vld [vmem:[%s5 + $0x10] sm:$0xf]
  %v2332 = vld [vmem:[%s5 + $0x14] sm:$0xf]
  %v2333 = vld [vmem:[%s5 + $0x18] sm:$0xf]
  %v2334 = vld [vmem:[%s5 + $0x1c] sm:$0xf]
  %v2335 = vld [vmem:[%s5 + $0x20] sm:$0xf]
  %v2336 = vld [vmem:[%s5 + $0x24] sm:$0xf]
  %v2337 = vld [vmem:[%s5 + $0x28] sm:$0xf]
  %v2338 = vld [vmem:[%s5 + $0x2c] sm:$0xf]
  %v2339 = vld [vmem:[%s5 + $0x30] sm:$0xf]
  %v2340 = vld [vmem:[%s5 + $0x34] sm:$0xf]
  %v2341 = vld [vmem:[%s5 + $0x38] sm:$0xf]
  %v2342 = vld [vmem:[%s5 + $0x3c] sm:$0xf]
  %v2343 = vld [vmem:[%s6] sm:$0x1]
  %v2345 = vlaneseq
  %v2346 = vshrl.u32 %v2345, 7
  %v2347 = vsub.s32 0, %v2346
  %v2348 = vrot.slane %v2343, %v2347
  %v2366 = vunpack.c.l.b16 %v2327
  %v2367 = vunpack.c.l.b16 %v2328
  %v2368 = vunpack.c.l.b16 %v2329
  %v2369 = vunpack.c.l.b16 %v2330
  %v2370 = vunpack.c.l.b16 %v2331
  %v2371 = vunpack.c.l.b16 %v2332
  %v2372 = vunpack.c.l.b16 %v2333
  %v2373 = vunpack.c.l.b16 %v2334
  %v2374 = vunpack.c.l.b16 %v2335
  %v2375 = vunpack.c.l.b16 %v2336
  %v2376 = vunpack.c.l.b16 %v2337
  %v2377 = vunpack.c.l.b16 %v2338
  %v2378 = vunpack.c.l.b16 %v2339
  %v2379 = vunpack.c.l.b16 %v2340
  %v2380 = vunpack.c.l.b16 %v2341
  %v2381 = vunpack.c.l.b16 %v2342
  %v2382 = vpack.c.b16 %v2367, %v2366
  %v2383 = vpack.c.b16 %v2369, %v2368
  %v2384 = vpack.c.b16 %v2371, %v2370
  %v2385 = vpack.c.b16 %v2373, %v2372
  %v2386 = vpack.c.b16 %v2375, %v2374
  %v2387 = vpack.c.b16 %v2377, %v2376
  %v2388 = vpack.c.b16 %v2379, %v2378
  %v2389 = vpack.c.b16 %v2381, %v2380
  %2398 = vmatprep.subr.bf16.mxu0 0
  %2399 = vmatpush1.bf16.msra.mxu0 %v2382
  %2400 = vmatprep.subr.bf16.mxu0 0
  %2401 = vmatpush1.bf16.msra.mxu0 %v2383
  %2402 = vmatprep.subr.bf16.mxu0 0
  %2403 = vmatpush1.bf16.msra.mxu0 %v2384
  %2404 = vmatprep.subr.bf16.mxu0 0
  %2405 = vmatpush1.bf16.msra.mxu0 %v2385
  %2406 = vmatprep.subr.bf16.mxu0 0
  %2407 = vmatpush1.bf16.msra.mxu0 %v2386
  %2408 = vmatprep.subr.bf16.mxu0 0
  %2409 = vmatpush1.bf16.msra.mxu0 %v2387
  %2410 = vmatprep.subr.bf16.mxu0 0
  %2411 = vmatpush1.bf16.msra.mxu0 %v2388
  %2412 = vmatprep.subr.bf16.mxu0 0
  %2413 = vmatpush1.bf16.msra.mxu0 %v2389
  %2414 = vmatprep.subr.bf16.mxu0 0
  %2415 = vmatpush1.bf16.msra.mxu0 0
  %2416 = vmatprep.subr.bf16.mxu0 0
  %2417 = vmatpush1.bf16.msra.mxu0 0
  %2418 = vmatprep.subr.bf16.mxu0 0
  %2419 = vmatpush1.bf16.msra.mxu0 0
  %2420 = vmatprep.subr.bf16.mxu0 0
  %2421 = vmatpush1.bf16.msra.mxu0 0
  %2422 = vmatprep.subr.bf16.mxu0 0
  %2423 = vmatpush1.bf16.msra.mxu0 0
  %2424 = vmatprep.subr.bf16.mxu0 0
  %2425 = vmatpush1.bf16.msra.mxu0 0
  %2426 = vmatprep.subr.bf16.mxu0 0
  %2427 = vmatpush1.bf16.msra.mxu0 0
  %2428 = vmatprep.subr.bf16.mxu0 0
  %2429 = vmatpush1.bf16.msra.mxu0 0
  %2430 = vmatprep.mubr.bf16.mxu0 0
  %2431 = vmatmul.mubr.bf16.gmra.mrb[0].mxu0 %v2326
  %v2432 = vpop.f32.mrb[0].mxu0
  %v2433 = vadd.f32 %v2348, %v2432
  %v2434 = vpop.f32.mrb[0].mxu0
  %v2435 = vpop.f32.mrb[0].mxu0
  %v2436 = vadd.f32 %v2348, %v2435
  %v2437 = vpop.f32.mrb[0].mxu0
  %2438 = vdwg.mxu0
  %v2439 = vmax.f32 %v2433, 0.0
  %v2440 = vmax.f32 %v2436, 0.0
  %v2441 = vpack.c.bf16 %v2440, %v2439
  %v2442 = vld [vmem:[%s7] sm:$0xf]
  %v2443 = vld [vmem:[%s7 + $0x4] sm:$0xf]
  %v2444 = vld [vmem:[%s7 + $0x8] sm:$0xf]
  %v2445 = vld [vmem:[%s7 + $0xc] sm:$0xf]
  %v2446 = vld [vmem:[%s7 + $0x10] sm:$0xf]
  %v2447 = vld [vmem:[%s7 + $0x14] sm:$0xf]
  %v2448 = vld [vmem:[%s7 + $0x18] sm:$0xf]
  %v2449 = vld [vmem:[%s7 + $0x1c] sm:$0xf]
  %v2450 = vld [vmem:[%s7 + $0x20] sm:$0xf]
  %v2451 = vld [vmem:[%s7 + $0x24] sm:$0xf]
  %v2452 = vld [vmem:[%s7 + $0x28] sm:$0xf]
  %v2453 = vld [vmem:[%s7 + $0x2c] sm:$0xf]
  %v2454 = vld [vmem:[%s7 + $0x30] sm:$0xf]
  %v2455 = vld [vmem:[%s7 + $0x34] sm:$0xf]
  %v2456 = vld [vmem:[%s7 + $0x38] sm:$0xf]
  %v2457 = vld [vmem:[%s7 + $0x3c] sm:$0xf]
  %v2458 = vld [vmem:[%s8] sm:$0x1]
  %v2460 = vlaneseq
  %v2461 = vshrl.u32 %v2460, 7
  %v2462 = vsub.s32 0, %v2461
  %v2463 = vrot.slane %v2458, %v2462
  %v2481 = vunpack.c.l.b16 %v2442
  %v2482 = vunpack.c.l.b16 %v2443
  %v2483 = vunpack.c.l.b16 %v2444
  %v2484 = vunpack.c.l.b16 %v2445
  %v2485 = vunpack.c.l.b16 %v2446
  %v2486 = vunpack.c.l.b16 %v2447
  %v2487 = vunpack.c.l.b16 %v2448
  %v2488 = vunpack.c.l.b16 %v2449
  %v2489 = vunpack.c.l.b16 %v2450
  %v2490 = vunpack.c.l.b16 %v2451
  %v2491 = vunpack.c.l.b16 %v2452
  %v2492 = vunpack.c.l.b16 %v2453
  %v2493 = vunpack.c.l.b16 %v2454
  %v2494 = vunpack.c.l.b16 %v2455
  %v2495 = vunpack.c.l.b16 %v2456
  %v2496 = vunpack.c.l.b16 %v2457
  %v2497 = vpack.c.b16 %v2482, %v2481
  %v2498 = vpack.c.b16 %v2484, %v2483
  %v2499 = vpack.c.b16 %v2486, %v2485
  %v2500 = vpack.c.b16 %v2488, %v2487
  %v2501 = vpack.c.b16 %v2490, %v2489
  %v2502 = vpack.c.b16 %v2492, %v2491
  %v2503 = vpack.c.b16 %v2494, %v2493
  %v2504 = vpack.c.b16 %v2496, %v2495
  %2513 = vmatprep.subr.bf16.mxu0 0
  %2514 = vmatpush1.bf16.msra.mxu0 %v2497
  %2515 = vmatprep.subr.bf16.mxu0 0
  %2516 = vmatpush1.bf16.msra.mxu0 %v2498
  %2517 = vmatprep.subr.bf16.mxu0 0
  %2518 = vmatpush1.bf16.msra.mxu0 %v2499
  %2519 = vmatprep.subr.bf16.mxu0 0
  %2520 = vmatpush1.bf16.msra.mxu0 %v2500
  %2521 = vmatprep.subr.bf16.mxu0 0
  %2522 = vmatpush1.bf16.msra.mxu0 %v2501
  %2523 = vmatprep.subr.bf16.mxu0 0
  %2524 = vmatpush1.bf16.msra.mxu0 %v2502
  %2525 = vmatprep.subr.bf16.mxu0 0
  %2526 = vmatpush1.bf16.msra.mxu0 %v2503
  %2527 = vmatprep.subr.bf16.mxu0 0
  %2528 = vmatpush1.bf16.msra.mxu0 %v2504
  %2529 = vmatprep.subr.bf16.mxu0 0
  %2530 = vmatpush1.bf16.msra.mxu0 0
  %2531 = vmatprep.subr.bf16.mxu0 0
  %2532 = vmatpush1.bf16.msra.mxu0 0
  %2533 = vmatprep.subr.bf16.mxu0 0
  %2534 = vmatpush1.bf16.msra.mxu0 0
  %2535 = vmatprep.subr.bf16.mxu0 0
  %2536 = vmatpush1.bf16.msra.mxu0 0
  %2537 = vmatprep.subr.bf16.mxu0 0
  %2538 = vmatpush1.bf16.msra.mxu0 0
  %2539 = vmatprep.subr.bf16.mxu0 0
  %2540 = vmatpush1.bf16.msra.mxu0 0
  %2541 = vmatprep.subr.bf16.mxu0 0
  %2542 = vmatpush1.bf16.msra.mxu0 0
  %2543 = vmatprep.subr.bf16.mxu0 0
  %2544 = vmatpush1.bf16.msra.mxu0 0
  %2545 = vmatprep.mubr.bf16.mxu0 0
  %2546 = vmatmul.mubr.bf16.gmra.mrb[0].mxu0 %v2441
  %v2547 = vpop.f32.mrb[0].mxu0
  %v2548 = vadd.f32 %v2463, %v2547
  %v2549 = vpop.f32.mrb[0].mxu0
  %v2550 = vpop.f32.mrb[0].mxu0
  %v2551 = vadd.f32 %v2463, %v2550
  %v2552 = vpop.f32.mrb[0].mxu0
  %2553 = vdwg.mxu0
  %v2554 = vmax.f32 %v2548, 0.0
  %v2555 = vmax.f32 %v2551, 0.0
  %v2556 = vpack.c.bf16 %v2555, %v2554
  %v2557 = vld [vmem:[%s9] sm:$0xf]
  %v2558 = vld [vmem:[%s9 + $0x4] sm:$0xf]
  %v2559 = vld [vmem:[%s9 + $0x8] sm:$0xf]
  %v2560 = vld [vmem:[%s9 + $0xc] sm:$0xf]
  %v2561 = vld [vmem:[%s9 + $0x10] sm:$0xf]
  %v2562 = vld [vmem:[%s9 + $0x14] sm:$0xf]
  %v2563 = vld [vmem:[%s9 + $0x18] sm:$0xf]
  %v2564 = vld [vmem:[%s9 + $0x1c] sm:$0xf]
  %v2565 = vld [vmem:[%s9 + $0x20] sm:$0xf]
  %v2566 = vld [vmem:[%s9 + $0x24] sm:$0xf]
  %v2567 = vld [vmem:[%s9 + $0x28] sm:$0xf]
  %v2568 = vld [vmem:[%s9 + $0x2c] sm:$0xf]
  %v2569 = vld [vmem:[%s9 + $0x30] sm:$0xf]
  %v2570 = vld [vmem:[%s9 + $0x34] sm:$0xf]
  %v2571 = vld [vmem:[%s9 + $0x38] sm:$0xf]
  %v2572 = vld [vmem:[%s9 + $0x3c] sm:$0xf]
  %v2573 = vld [vmem:[%s10] sm:$0x1]
  %v2575 = vlaneseq
  %v2576 = vshrl.u32 %v2575, 7
  %v2577 = vsub.s32 0, %v2576
  %v2578 = vrot.slane %v2573, %v2577
  %v2596 = vunpack.c.l.b16 %v2557
  %v2597 = vunpack.c.l.b16 %v2558
  %v2598 = vunpack.c.l.b16 %v2559
  %v2599 = vunpack.c.l.b16 %v2560
  %v2600 = vunpack.c.l.b16 %v2561
  %v2601 = vunpack.c.l.b16 %v2562
  %v2602 = vunpack.c.l.b16 %v2563
  %v2603 = vunpack.c.l.b16 %v2564
  %v2604 = vunpack.c.l.b16 %v2565
  %v2605 = vunpack.c.l.b16 %v2566
  %v2606 = vunpack.c.l.b16 %v2567
  %v2607 = vunpack.c.l.b16 %v2568
  %v2608 = vunpack.c.l.b16 %v2569
  %v2609 = vunpack.c.l.b16 %v2570
  %v2610 = vunpack.c.l.b16 %v2571
  %v2611 = vunpack.c.l.b16 %v2572
  %v2612 = vpack.c.b16 %v2597, %v2596
  %v2613 = vpack.c.b16 %v2599, %v2598
  %v2614 = vpack.c.b16 %v2601, %v2600
  %v2615 = vpack.c.b16 %v2603, %v2602
  %v2616 = vpack.c.b16 %v2605, %v2604
  %v2617 = vpack.c.b16 %v2607, %v2606
  %v2618 = vpack.c.b16 %v2609, %v2608
  %v2619 = vpack.c.b16 %v2611, %v2610
  %2628 = vmatprep.subr.bf16.mxu0 0
  %2629 = vmatpush1.bf16.msra.mxu0 %v2612
  %2630 = vmatprep.subr.bf16.mxu0 0
  %2631 = vmatpush1.bf16.msra.mxu0 %v2613
  %2632 = vmatprep.subr.bf16.mxu0 0
  %2633 = vmatpush1.bf16.msra.mxu0 %v2614
  %2634 = vmatprep.subr.bf16.mxu0 0
  %2635 = vmatpush1.bf16.msra.mxu0 %v2615
  %2636 = vmatprep.subr.bf16.mxu0 0
  %2637 = vmatpush1.bf16.msra.mxu0 %v2616
  %2638 = vmatprep.subr.bf16.mxu0 0
  %2639 = vmatpush1.bf16.msra.mxu0 %v2617
  %2640 = vmatprep.subr.bf16.mxu0 0
  %2641 = vmatpush1.bf16.msra.mxu0 %v2618
  %2642 = vmatprep.subr.bf16.mxu0 0
  %2643 = vmatpush1.bf16.msra.mxu0 %v2619
  %2644 = vmatprep.subr.bf16.mxu0 0
  %2645 = vmatpush1.bf16.msra.mxu0 0
  %2646 = vmatprep.subr.bf16.mxu0 0
  %2647 = vmatpush1.bf16.msra.mxu0 0
  %2648 = vmatprep.subr.bf16.mxu0 0
  %2649 = vmatpush1.bf16.msra.mxu0 0
  %2650 = vmatprep.subr.bf16.mxu0 0
  %2651 = vmatpush1.bf16.msra.mxu0 0
  %2652 = vmatprep.subr.bf16.mxu0 0
  %2653 = vmatpush1.bf16.msra.mxu0 0
  %2654 = vmatprep.subr.bf16.mxu0 0
  %2655 = vmatpush1.bf16.msra.mxu0 0
  %2656 = vmatprep.subr.bf16.mxu0 0
  %2657 = vmatpush1.bf16.msra.mxu0 0
  %2658 = vmatprep.subr.bf16.mxu0 0
  %2659 = vmatpush1.bf16.msra.mxu0 0
  %2660 = vmatprep.mubr.bf16.mxu0 0
  %2661 = vmatmul.mubr.bf16.gmra.mrb[0].mxu0 %v2556
  %v2662 = vpop.f32.mrb[0].mxu0
  %v2663 = vadd.f32 %v2578, %v2662
  %v2664 = vpop.f32.mrb[0].mxu0
  %v2665 = vpop.f32.mrb[0].mxu0
  %v2666 = vadd.f32 %v2578, %v2665
  %v2667 = vpop.f32.mrb[0].mxu0
  %2668 = vdwg.mxu0
  %2669 = vst [vmem:[%s11] sm:$0xff] %v2663
  %2670 = vst [vmem:[%s11 + $0x8] sm:$0xff] %v2666
  // Predicated region
  $region46: #{sac_forward.1} parent=0 // pred_check
    _
  $region47: #{sac_forward.1} parent=0 // pred_check_branch
    %2672 = sbr.rel (0) target = $region49
  $region48: #{sac_forward.1} parent=0 // pred_region
    _
  $region49: #{sac_forward.1} parent=0 // pred_fallthru
    _
  // Predicated region
  $region50: #{sac_forward.1} parent=0 // pred_check
    _
  $region51: #{sac_forward.1} parent=0 // pred_check_branch
    %2674 = sbr.rel (0) target = $region53
  $region52: #{sac_forward.1} parent=0 // pred_region
    _
  $region53: #{sac_forward.1} parent=0 // pred_fallthru
    _
  // Predicated region
  $region54: #{sac_forward.1} parent=0 // pred_check
    _
  $region55: #{sac_forward.1} parent=0 // pred_check_branch
    %2676 = sbr.rel (0) target = $region57
  $region56: #{sac_forward.1} parent=0 // pred_region
    _
  $region57: #{sac_forward.1} parent=0 // pred_fallthru
    _
  // Predicated region
  $region58: #{sac_forward.1} parent=0 // pred_check
    _
  $region59: #{sac_forward.1} parent=0 // pred_check_branch
    %2678 = sbr.rel (0) target = $region61
  $region60: #{sac_forward.1} parent=0 // pred_region
    _
  $region61: #{sac_forward.1} parent=0 // pred_fallthru
    _

</llo_original>
